<compile_context>
chip_gen: v7x
topology: tpu7x:2x2x1
jax: 0.10.0
libtpu: 0.0.40
codegen_flags: <defaults>
</compile_context>

<pallas_src>
import functools

import jax
import jax.numpy as jnp
from jax.experimental import pallas as pl
from jax.experimental.pallas import tpu as pltpu

_N_RGB = 3
_N_HEADS = 4  # 3 rgb rows + 1 mask row


def _round_up(v, m):
    return (v + m - 1) // m * m


def _vmem_limit_bytes():
    # ~25% headroom below physical per-core VMEM (64 MiB v7x, 128 MiB v5e/v6e).
    try:
        cap = pltpu.get_tpu_info().vmem_capacity_bytes
    except Exception:
        cap = 64 * 1024 * 1024
    return int(cap * 3 // 4)


# --------------------------------------------------------------------------
# Fused StyleBlock kernel: one batch element per grid step.
# --------------------------------------------------------------------------
def _style_block_kernel(x_ref, s1_ref, d1_ref, w1_ref, b1_ref,
                        s2_ref, d2_ref, w2_ref, b2_ref,
                        wh_ref, bh_ref, prev_ref,
                        x_out_ref, heads_ref,
                        xe1_ref, xe2_ref,
                        *, k, pad, H, W, C_in, C_out, lpad, n_rgb):
    """
    x_ref   : (1, C_in, H*W)  bf16 input, spatial flattened on lanes
    s1_ref  : (1, C_in, 1)    f32 style1 modulation (scales input channels)
    d1_ref  : (1, C_out, 1)   f32 demod factor for conv1
    w1_ref  : (k*k, C_out, C_in) bf16 UNMODULATED scaled base weight (per tap)
    b1_ref  : (C_out, 1)      f32 folded bias (conv1.bias + bias1)
    s2/d2/w2/b2 : same for conv2 (C_in == C_out there)
    wh_ref  : (1, 4, C_out)   bf16 per-batch modulated 1x1 head weights
    bh_ref  : (4, 1)          f32 folded head biases
    prev_ref: (1, 4, H*W)     f32 stacked residual [rgb_prev; mask_prev]
    x_out   : (1, C_out, H*W) f32 feature map out
    heads   : (1, 4, H*W)     f32 rows 0..2 rgb, row 3 sigmoid(mask)
    xe1/xe2 : (C, 2*lpad+H*W) bf16 lane-padded scratch (zero margins handle
              rows that fall outside the image)
    """
    HW = H * W

    # k distinct column-validity masks (hoisted; handle row wrap-around).
    col = jax.lax.broadcasted_iota(jnp.int32, (1, HW), 1) % W
    col_mask = {}
    for dx in range(-pad, pad + 1):
        if dx != 0:
            col_mask[dx] = ((col + dx >= 0) & (col + dx < W)).astype(jnp.bfloat16)

    def fill_padded(xe_ref, xs_bf, c):
        # zero margins re-written every program (megacore-safe), interior
        # store is 128-lane aligned (lpad is a multiple of 128).
        if lpad > 0:
            zeros_pad = jnp.zeros((c, lpad), jnp.bfloat16)
            xe_ref[:, :lpad] = zeros_pad
            xe_ref[:, lpad + HW:] = zeros_pad
        xe_ref[:, lpad:lpad + HW] = xs_bf

    def conv_from_padded(xe_ref, w_ref):
        # k*k per-tap bf16 dots, f32 SSA accumulation (no im2col scratch).
        acc = None
        for ky in range(k):
            for kx in range(k):
                dy, dx = ky - pad, kx - pad
                off = dy * W + dx                               # flattened shift
                tap = xe_ref[:, lpad + off:lpad + off + HW]     # (C, HW) bf16
                if dx != 0:
                    tap = tap * col_mask[dx]
                d = jnp.dot(w_ref[ky * k + kx], tap,
                            preferred_element_type=jnp.float32)
                acc = d if acc is None else acc + d
        return acc                                              # (C_out, HW) f32

    # ---- conv1: style-scaled input, base weight, demod+bias+leaky epilogue --
    xs1 = (x_ref[0].astype(jnp.float32) * s1_ref[0]).astype(jnp.bfloat16)
    fill_padded(xe1_ref, xs1, C_in)
    h1 = conv_from_padded(xe1_ref, w1_ref) * d1_ref[0] + b1_ref[...]
    h1 = jnp.where(h1 >= 0, h1, 0.2 * h1)                       # (C_out, HW) f32

    # ---- conv2 (input stays in VMEM, never round-trips HBM) ----------------
    xs2 = (h1 * s2_ref[0]).astype(jnp.bfloat16)
    fill_padded(xe2_ref, xs2, C_out)
    h2 = conv_from_padded(xe2_ref, w2_ref) * d2_ref[0] + b2_ref[...]
    h2 = jnp.where(h2 >= 0, h2, 0.2 * h2)                       # (C_out, HW) f32
    x_out_ref[...] = h2[None].astype(x_out_ref.dtype)

    # ---- fused to_rgb / to_mask 1x1 heads (reuse h2 from VMEM) -------------
    heads = jnp.dot(wh_ref[0], h2.astype(jnp.bfloat16),
                    preferred_element_type=jnp.float32)          # (4, HW) f32
    heads = heads + bh_ref[...] + prev_ref[0]
    heads_ref[0, :n_rgb, :] = heads[:n_rgb, :].astype(heads_ref.dtype)
    heads_ref[0, n_rgb:, :] = jax.nn.sigmoid(heads[n_rgb:, :]).astype(heads_ref.dtype)


# --------------------------------------------------------------------------
# Wrapper-side (tiny, f32) precompute: style modulation linear, demod factors,
# tap-major bf16 base weights, folded biases.
# --------------------------------------------------------------------------
def _mod_linear(style, p):
    return style @ p["mod_w"].T + p["mod_b"]


def _conv_prep(p, extra_bias, style):
    w = p["weight"] * p["scale"]                      # (C_out, C_in, k, k) f32
    k = w.shape[-1]
    s = _mod_linear(style, p)                         # (B, C_in)
    w2 = jnp.sum(w * w, axis=(2, 3))                  # (C_out, C_in)
    d = jax.lax.rsqrt((s * s) @ w2.T + 1e-8)          # (B, C_out)  demod
    w_taps = jnp.transpose(w, (2, 3, 0, 1)).reshape(k * k, w.shape[0], w.shape[1])
    b = (p["bias"] + extra_bias).reshape(-1, 1)
    return s[..., None], d[..., None], w_taps.astype(jnp.bfloat16), b


def _heads_prep(pr, pm, rgb_bias, mask_bias, style_rgb, style_mask):
    sr = _mod_linear(style_rgb, pr)                   # (B, C)
    sm = _mod_linear(style_mask, pm)                  # (B, C)
    wr = (pr["weight"] * pr["scale"]).reshape(_N_RGB, -1)          # (3, C)
    wm = (pm["weight"] * pm["scale"]).reshape(1, -1)                # (1, C)
    wh = jnp.concatenate([wr[None] * sr[:, None, :],
                          wm[None] * sm[:, None, :]], axis=1)       # (B, 4, C)
    bh = jnp.concatenate([pr["bias"] + rgb_bias,
                          pm["bias"] + mask_bias]).reshape(-1, 1)   # (4, 1)
    return wh.astype(jnp.bfloat16), bh


# --------------------------------------------------------------------------
# StyleBlock forward (single fused pallas_call, grid over batch)
# --------------------------------------------------------------------------
def style_block_forward(params, x, rgb_prev, mask_prev,
                        style1, style2, style_rgb, style_mask, upsample=False):
    if upsample:
        # TODO(synk): bilinear 2x upsample kept as plain-JAX glue; border
        # behaviour not bit-verified against torch.nn.Upsample(align_corners=False).
        B, C, H, W = x.shape
        x = jax.image.resize(x, (B, C, 2 * H, 2 * W), method="bilinear")
        if rgb_prev is not None:
            rgb_prev = jax.image.resize(rgb_prev, (B, _N_RGB, 2 * H, 2 * W), method="bilinear")
        if mask_prev is not None:
            mask_prev = jax.image.resize(mask_prev, (B, 1, 2 * H, 2 * W), method="bilinear")

    B, C_in, H, W = x.shape
    C_out = params["conv1"]["weight"].shape[0]
    k, pad = 3, 1
    HW = H * W
    lpad = _round_up(pad * W + pad, 128)
    assert lpad >= pad * W + pad, "zero margin must cover the max tap shift"

    s1, d1, w1, b1 = _conv_prep(params["conv1"], params["bias1"], style1)
    s2, d2, w2, b2 = _conv_prep(params["conv2"], params["bias2"], style2)
    wh, bh = _heads_prep(params["to_rgb"], params["to_mask"],
                         params["to_rgb_bias"], params["to_mask_bias"],
                         style_rgb, style_mask)

    rp = rgb_prev if rgb_prev is not None else jnp.zeros((B, _N_RGB, H, W), jnp.float32)
    mp = mask_prev if mask_prev is not None else jnp.zeros((B, 1, H, W), jnp.float32)
    prev = jnp.concatenate([rp, mp], axis=1).reshape(B, _N_HEADS, HW).astype(jnp.float32)

    x_flat = x.reshape(B, C_in, HW).astype(jnp.bfloat16)   # bf16 HBM read

    kernel = functools.partial(_style_block_kernel, k=k, pad=pad, H=H, W=W,
                               C_in=C_in, C_out=C_out, lpad=lpad, n_rgb=_N_RGB)

    x_out, heads = pl.pallas_call(
        kernel,
        out_shape=(jax.ShapeDtypeStruct((B, C_out, HW), jnp.float32),
                   jax.ShapeDtypeStruct((B, _N_HEADS, HW), jnp.float32)),
        grid=(B,),
        in_specs=[
            pl.BlockSpec((1, C_in, HW), lambda b: (b, 0, 0)),          # x
            pl.BlockSpec((1, C_in, 1), lambda b: (b, 0, 0)),           # s1
            pl.BlockSpec((1, C_out, 1), lambda b: (b, 0, 0)),          # d1
            pl.BlockSpec((k * k, C_out, C_in), lambda b: (0, 0, 0)),   # w1 (bf16, grid-invariant)
            pl.BlockSpec((C_out, 1), lambda b: (0, 0)),                # b1
            pl.BlockSpec((1, C_out, 1), lambda b: (b, 0, 0)),          # s2
            pl.BlockSpec((1, C_out, 1), lambda b: (b, 0, 0)),          # d2
            pl.BlockSpec((k * k, C_out, C_out), lambda b: (0, 0, 0)),  # w2
            pl.BlockSpec((C_out, 1), lambda b: (0, 0)),                # b2
            pl.BlockSpec((1, _N_HEADS, C_out), lambda b: (b, 0, 0)),   # head weights
            pl.BlockSpec((_N_HEADS, 1), lambda b: (0, 0)),             # head biases
            pl.BlockSpec((1, _N_HEADS, HW), lambda b: (b, 0, 0)),      # prev rgb/mask
        ],
        out_specs=(pl.BlockSpec((1, C_out, HW), lambda b: (b, 0, 0)),
                   pl.BlockSpec((1, _N_HEADS, HW), lambda b: (b, 0, 0))),
        scratch_shapes=[
            pltpu.VMEM((C_in, HW + 2 * lpad), jnp.bfloat16),   # padded conv1 input
            pltpu.VMEM((C_out, HW + 2 * lpad), jnp.bfloat16),  # padded conv2 input
        ],
        compiler_params=pltpu.CompilerParams(
            dimension_semantics=("parallel",),
            vmem_limit_bytes=_vmem_limit_bytes()),
    )(x_flat, s1, d1, w1, b1, s2, d2, w2, b2, wh, bh, prev)

    x_out = x_out.reshape(B, C_out, H, W)
    heads = heads.reshape(B, _N_HEADS, H, W)
    return x_out, heads[:, :_N_RGB], heads[:, _N_RGB:]


# --------------------------------------------------------------------------
# Parameter init (deterministic, shapes per the PyTorch __init__)
# --------------------------------------------------------------------------
def init_modconv(key, in_ch, out_ch, style_dim, ksize):
    k1, k2, k3, k4 = jax.random.split(key, 4)
    fan_in = in_ch * ksize * ksize
    return {
        "weight": jax.random.normal(k1, (out_ch, in_ch, ksize, ksize),
                                    jnp.float32) * jnp.sqrt(2.0 / fan_in),
        "bias": jax.random.normal(k2, (out_ch,), jnp.float32) * 0.1,
        "mod_w": jax.random.normal(k3, (in_ch, style_dim), jnp.float32) * 0.1,
        "mod_b": 1.0 + jax.random.normal(k4, (in_ch,), jnp.float32) * 0.1,
        "scale": 1.0 / (fan_in ** 0.5),
    }


def init_style_block(key, in_ch, out_ch, style_dim):
    ks = jax.random.split(key, 7)
    return {
        "conv1": init_modconv(ks[0], in_ch, out_ch, style_dim, 3),
        "conv2": init_modconv(ks[1], out_ch, out_ch, style_dim, 3),
        "to_rgb": init_modconv(ks[2], out_ch, 3, style_dim, 1),
        "to_mask": init_modconv(ks[3], out_ch, 1, style_dim, 1),
        "bias1": jax.random.normal(ks[4], (out_ch,), jnp.float32) * 0.1,
        "bias2": jax.random.normal(ks[5], (out_ch,), jnp.float32) * 0.1,
        "to_rgb_bias": jax.random.normal(ks[6], (3,), jnp.float32) * 0.1,
        "to_mask_bias": jnp.zeros((1,), jnp.float32),
    }


# --------------------------------------------------------------------------
# Pure-JAX reference (PyTorch semantics).  mirror_bf16=True additionally
# mirrors the kernel's numerics (style-scaled bf16 input, bf16 base weight,
# f32 accumulation, f32 demod epilogue).
# --------------------------------------------------------------------------
def _ref_modconv(x, style_mod, w_scaled, bias, padding, demodulate, mirror_bf16):
    xs = x * style_mod[:, :, None, None]
    w = w_scaled
    if mirror_bf16:
        xs = xs.astype(jnp.bfloat16)
        w = w.astype(jnp.bfloat16)
    out = jax.lax.conv_general_dilated(
        xs, w, (1, 1), [(padding, padding), (padding, padding)],
        dimension_numbers=("NCHW", "OIHW", "NCHW"),
        preferred_element_type=jnp.float32)
    if demodulate:
        w2 = jnp.sum(w_scaled * w_scaled, axis=(2, 3))              # (C_out, C_in)
        d = jax.lax.rsqrt((style_mod * style_mod) @ w2.T + 1e-8)    # (B, C_out)
        out = out * d[:, :, None, None]
    return out + bias.reshape(1, -1, 1, 1)


def ref_style_block(params, x, rgb_prev, mask_prev, s1, s2, sr, smk,
                    mirror_bf16=False):
    def mod(style, p): return style @ p["mod_w"].T + p["mod_b"]
    def lrelu(v): return jnp.where(v >= 0, v, 0.2 * v)
    p1 = params["conv1"]
    h = lrelu(_ref_modconv(x, mod(s1, p1), p1["weight"] * p1["scale"],
                           p1["bias"] + params["bias1"], 1, True, mirror_bf16))
    p2 = params["conv2"]
    h = lrelu(_ref_modconv(h, mod(s2, p2), p2["weight"] * p2["scale"],
                           p2["bias"] + params["bias2"], 1, True, mirror_bf16))
    pr, pm = params["to_rgb"], params["to_mask"]
    rgb = _ref_modconv(h, mod(sr, pr), pr["weight"] * pr["scale"],
                       pr["bias"] + params["to_rgb_bias"], 0, False, mirror_bf16)
    msk = _ref_modconv(h, mod(smk, pm), pm["weight"] * pm["scale"],
                       pm["bias"] + params["to_mask_bias"], 0, False, mirror_bf16)
    if rgb_prev is not None:
        rgb = rgb + rgb_prev
    if mask_prev is not None:
        msk = msk + mask_prev
    return h, rgb, jax.nn.sigmoid(msk)


if __name__ == "__main__":
    key = jax.random.PRNGKey(0)
    B, C_in, C_out, H, W, style_dim = 2, 4, 8, 16, 16, 32
    kp, kx, kr, km, k1, k2, k3, k4 = jax.random.split(key, 8)

    params = init_style_block(kp, C_in, C_out, style_dim)
    x = jax.random.normal(kx, (B, C_in, H, W), jnp.float32)
    rgb_prev = jax.random.normal(kr, (B, 3, H, W), jnp.float32)
    mask_prev = jax.random.normal(km, (B, 1, H, W), jnp.float32)
    s1 = jax.random.normal(k1, (B, style_dim), jnp.float32)
    s2 = jax.random.normal(k2, (B, style_dim), jnp.float32)
    srgb = jax.random.normal(k3, (B, style_dim), jnp.float32)
    smask = jax.random.normal(k4, (B, style_dim), jnp.float32)

    x_out, rgb, mask = jax.block_until_ready(
        style_block_forward(params, x, rgb_prev, mask_prev,
                            s1, s2, srgb, smask, upsample=False))

    assert x_out.shape == (B, C_out, H, W)
    assert rgb.shape == (B, 3, H, W)
    assert mask.shape == (B, 1, H, W)

    # Check vs a reference that mirrors the kernel's MXU numerics
    # (bf16 operands, f32 accumulation, f32 demod/bias epilogue).
    xm, rm, mm = ref_style_block(params, x, rgb_prev, mask_prev,
                                 s1, s2, srgb, smask, mirror_bf16=True)
    assert jnp.allclose(x_out, xm, atol=3e-2, rtol=3e-2)
    assert jnp.allclose(rgb, rm, atol=3e-2, rtol=3e-2)
    assert jnp.allclose(mask, mm, atol=3e-2, rtol=3e-2)

    # Loose sanity check vs pure-f32 PyTorch semantics (differences are only
    # bf16 rounding of the MXU operands through two stacked convs).
    xf, rf, mf = ref_style_block(params, x, rgb_prev, mask_prev,
                                 s1, s2, srgb, smask, mirror_bf16=False)
    assert jnp.allclose(x_out, xf, atol=2e-1, rtol=1e-1)
    assert jnp.allclose(rgb, rf, atol=2e-1, rtol=1e-1)
    assert jnp.allclose(mask, mf, atol=1e-1, rtol=1e-1)

    print("KERNEL_OK")
</pallas_src>

<mosaic_0001>
module attributes {stable_mosaic.version = 11 : i64} {
  func.func @_style_block_kernel(%arg0: i32, %arg1: memref<1x4x256xbf16, #tpu.memory_space<vmem>>, %arg2: memref<1x4x1xf32, #tpu.memory_space<vmem>>, %arg3: memref<1x8x1xf32, #tpu.memory_space<vmem>>, %arg4: memref<9x8x4xbf16, #tpu.memory_space<vmem>>, %arg5: memref<8x1xf32, #tpu.memory_space<vmem>>, %arg6: memref<1x8x1xf32, #tpu.memory_space<vmem>>, %arg7: memref<1x8x1xf32, #tpu.memory_space<vmem>>, %arg8: memref<9x8x8xbf16, #tpu.memory_space<vmem>>, %arg9: memref<8x1xf32, #tpu.memory_space<vmem>>, %arg10: memref<1x4x8xbf16, #tpu.memory_space<vmem>>, %arg11: memref<4x1xf32, #tpu.memory_space<vmem>>, %arg12: memref<1x4x256xf32, #tpu.memory_space<vmem>>, %arg13: memref<1x8x256xf32, #tpu.memory_space<vmem>>, %arg14: memref<1x4x256xf32, #tpu.memory_space<vmem>>, %arg15: memref<4x512xbf16, #tpu.memory_space<vmem>>, %arg16: memref<8x512xbf16, #tpu.memory_space<vmem>>) attributes {dimension_semantics = [#tpu.dimension_semantics<parallel>], iteration_bounds = array<i64: 2>, scalar_prefetch = 0 : i64, scratch_operands = 2 : i64, tpu.core_type = #tpu.core_type<tc>, window_params = [{transform_indices = @transform_0, window_bounds = array<i64: 1, 4, 256>}, {transform_indices = @transform_1, window_bounds = array<i64: 1, 4, 1>}, {transform_indices = @transform_2, window_bounds = array<i64: 1, 8, 1>}, {pipeline_mode = #tpu.pipeline_mode<synchronous>, transform_indices = @transform_3, window_bounds = array<i64: 9, 8, 4>}, {pipeline_mode = #tpu.pipeline_mode<synchronous>, transform_indices = @transform_4, window_bounds = array<i64: 8, 1>}, {transform_indices = @transform_5, window_bounds = array<i64: 1, 8, 1>}, {transform_indices = @transform_6, window_bounds = array<i64: 1, 8, 1>}, {pipeline_mode = #tpu.pipeline_mode<synchronous>, transform_indices = @transform_7, window_bounds = array<i64: 9, 8, 8>}, {pipeline_mode = #tpu.pipeline_mode<synchronous>, transform_indices = @transform_8, window_bounds = array<i64: 8, 1>}, {transform_indices = @transform_9, window_bounds = array<i64: 1, 4, 8>}, {pipeline_mode = #tpu.pipeline_mode<synchronous>, transform_indices = @transform_10, window_bounds = array<i64: 4, 1>}, {transform_indices = @transform_11, window_bounds = array<i64: 1, 4, 256>}, {transform_indices = @transform_12, window_bounds = array<i64: 1, 8, 256>}, {transform_indices = @transform_13, window_bounds = array<i64: 1, 4, 256>}]} {
    %0 = tpu.iota {dimensions = array<i32: 1>} : vector<1x256xi32>
    %c16_i32 = arith.constant 16 : i32
    %c0_i32 = arith.constant 0 : i32
    %1 = arith.cmpi eq, %c16_i32, %c0_i32 : i32
    %c1_i32 = arith.constant 1 : i32
    %2 = arith.select %1, %c1_i32, %c16_i32 : i32
    %3 = vector.broadcast %2 : i32 to vector<1x256xi32>
    %4 = arith.remsi %0, %3 : vector<1x256xi32>
    %c0_i32_0 = arith.constant 0 : i32
    %5 = vector.broadcast %c0_i32_0 : i32 to vector<1x256xi32>
    %6 = arith.cmpi ne, %4, %5 : vector<1x256xi32>
    %c0_i32_1 = arith.constant 0 : i32
    %7 = vector.broadcast %c0_i32_1 : i32 to vector<1x256xi32>
    %8 = arith.cmpi slt, %4, %7 : vector<1x256xi32>
    %c0_i32_2 = arith.constant 0 : i32
    %9 = arith.cmpi slt, %2, %c0_i32_2 : i32
    %10 = vector.broadcast %9 : i1 to vector<1x256xi1>
    %11 = vector.broadcast %10 : vector<1x256xi1> to vector<1x256xi1>
    %12 = arith.xori %8, %11 : vector<1x256xi1>
    %13 = arith.andi %12, %6 : vector<1x256xi1>
    %14 = vector.broadcast %2 : i32 to vector<1x256xi32>
    %15 = arith.addi %4, %14 : vector<1x256xi32>
    %16 = arith.select %13, %15, %4 : vector<1x256xi1>, vector<1x256xi32>
    %c-1_i32 = arith.constant -1 : i32
    %17 = vector.broadcast %c-1_i32 : i32 to vector<1x256xi32>
    %18 = arith.addi %16, %17 : vector<1x256xi32>
    %c0_i32_3 = arith.constant 0 : i32
    %19 = vector.broadcast %c0_i32_3 : i32 to vector<1x256xi32>
    %20 = arith.cmpi sge, %18, %19 : vector<1x256xi32>
    %c-1_i32_4 = arith.constant -1 : i32
    %21 = vector.broadcast %c-1_i32_4 : i32 to vector<1x256xi32>
    %22 = arith.addi %16, %21 : vector<1x256xi32>
    %c16_i32_5 = arith.constant 16 : i32
    %23 = vector.broadcast %c16_i32_5 : i32 to vector<1x256xi32>
    %24 = arith.cmpi slt, %22, %23 : vector<1x256xi32>
    %25 = arith.andi %20, %24 : vector<1x256xi1>
    %26 = arith.extui %25 : vector<1x256xi1> to vector<1x256xi32>
    %27 = arith.sitofp %26 : vector<1x256xi32> to vector<1x256xf32>
    %28 = arith.truncf %27 : vector<1x256xf32> to vector<1x256xbf16>
    %c1_i32_6 = arith.constant 1 : i32
    %29 = vector.broadcast %c1_i32_6 : i32 to vector<1x256xi32>
    %30 = arith.addi %16, %29 : vector<1x256xi32>
    %c0_i32_7 = arith.constant 0 : i32
    %31 = vector.broadcast %c0_i32_7 : i32 to vector<1x256xi32>
    %32 = arith.cmpi sge, %30, %31 : vector<1x256xi32>
    %c1_i32_8 = arith.constant 1 : i32
    %33 = vector.broadcast %c1_i32_8 : i32 to vector<1x256xi32>
    %34 = arith.addi %16, %33 : vector<1x256xi32>
    %c16_i32_9 = arith.constant 16 : i32
    %35 = vector.broadcast %c16_i32_9 : i32 to vector<1x256xi32>
    %36 = arith.cmpi slt, %34, %35 : vector<1x256xi32>
    %37 = arith.andi %32, %36 : vector<1x256xi1>
    %38 = arith.extui %37 : vector<1x256xi1> to vector<1x256xi32>
    %39 = arith.sitofp %38 : vector<1x256xi32> to vector<1x256xf32>
    %40 = arith.truncf %39 : vector<1x256xf32> to vector<1x256xbf16>
    %c0 = arith.constant 0 : index
    %c0_10 = arith.constant 0 : index
    %c0_11 = arith.constant 0 : index
    %41 = vector.load %arg1[%c0, %c0_10, %c0_11] : memref<1x4x256xbf16, #tpu.memory_space<vmem>>, vector<1x4x256xbf16>
    %42 = vector.shape_cast %41 : vector<1x4x256xbf16> to vector<4x256xbf16>
    %43 = arith.extf %42 : vector<4x256xbf16> to vector<4x256xf32>
    %c0_12 = arith.constant 0 : index
    %c0_13 = arith.constant 0 : index
    %c0_14 = arith.constant 0 : index
    %44 = vector.load %arg2[%c0_12, %c0_13, %c0_14] : memref<1x4x1xf32, #tpu.memory_space<vmem>>, vector<1x4x1xf32>
    %45 = vector.shape_cast %44 : vector<1x4x1xf32> to vector<4x1xf32>
    %46 = vector.broadcast %45 : vector<4x1xf32> to vector<4x256xf32>
    %47 = arith.mulf %43, %46 : vector<4x256xf32>
    %48 = arith.truncf %47 : vector<4x256xf32> to vector<4x256xbf16>
    %cst = arith.constant 0.000000e+00 : bf16
    %49 = vector.broadcast %cst : bf16 to vector<4x128xbf16>
    %c0_15 = arith.constant 0 : index
    %c0_16 = arith.constant 0 : index
    %50 = vector.load %arg15[%c0_15, %c0_16] : memref<4x512xbf16, #tpu.memory_space<vmem>>, vector<4x128xbf16>
    tpu.vector_store %arg15[%c0_15, %c0_16], %49 {strides = array<i32>} : memref<4x512xbf16, #tpu.memory_space<vmem>>, vector<4x128xbf16>,
    %c0_17 = arith.constant 0 : index
    %c384 = arith.constant 384 : index
    %51 = vector.load %arg15[%c0_17, %c384] : memref<4x512xbf16, #tpu.memory_space<vmem>>, vector<4x128xbf16>
    tpu.vector_store %arg15[%c0_17, %c384], %49 {strides = array<i32>} : memref<4x512xbf16, #tpu.memory_space<vmem>>, vector<4x128xbf16>,
    %c0_18 = arith.constant 0 : index
    %c128 = arith.constant 128 : index
    %52 = vector.load %arg15[%c0_18, %c128] : memref<4x512xbf16, #tpu.memory_space<vmem>>, vector<4x256xbf16>
    tpu.vector_store %arg15[%c0_18, %c128], %48 {strides = array<i32>} : memref<4x512xbf16, #tpu.memory_space<vmem>>, vector<4x256xbf16>,
    %c0_19 = arith.constant 0 : index
    %c111 = arith.constant 111 : index
    %53 = vector.load %arg15[%c0_19, %c111] : memref<4x512xbf16, #tpu.memory_space<vmem>>, vector<4x256xbf16>
    %54 = vector.broadcast %28 : vector<1x256xbf16> to vector<4x256xbf16>
    %55 = arith.mulf %53, %54 : vector<4x256xbf16>
    %c0_20 = arith.constant 0 : index
    %c0_21 = arith.constant 0 : index
    %c0_22 = arith.constant 0 : index
    %56 = vector.load %arg4[%c0_20, %c0_21, %c0_22] : memref<9x8x4xbf16, #tpu.memory_space<vmem>>, vector<1x8x4xbf16>
    %57 = vector.shape_cast %56 : vector<1x8x4xbf16> to vector<8x4xbf16>
    %cst_23 = arith.constant dense<0.000000e+00> : vector<8x256xf32>
    %58 = tpu.matmul %57, %55, %cst_23 {dimension_numbers = #tpu.dot_dimension_numbers<[1], [0], [0], [1], [0, 0, 1, 1], [], []>} : vector<8x4xbf16>, vector<4x256xbf16>, vector<8x256xf32> -> vector<8x256xf32>
    %c0_24 = arith.constant 0 : index
    %c112 = arith.constant 112 : index
    %59 = vector.load %arg15[%c0_24, %c112] : memref<4x512xbf16, #tpu.memory_space<vmem>>, vector<4x256xbf16>
    %c1 = arith.constant 1 : index
    %c0_25 = arith.constant 0 : index
    %c0_26 = arith.constant 0 : index
    %60 = vector.load %arg4[%c1, %c0_25, %c0_26] : memref<9x8x4xbf16, #tpu.memory_space<vmem>>, vector<1x8x4xbf16>
    %61 = vector.shape_cast %60 : vector<1x8x4xbf16> to vector<8x4xbf16>
    %cst_27 = arith.constant dense<0.000000e+00> : vector<8x256xf32>
    %62 = tpu.matmul %61, %59, %cst_27 {dimension_numbers = #tpu.dot_dimension_numbers<[1], [0], [0], [1], [0, 0, 1, 1], [], []>} : vector<8x4xbf16>, vector<4x256xbf16>, vector<8x256xf32> -> vector<8x256xf32>
    %63 = arith.addf %58, %62 : vector<8x256xf32>
    %c0_28 = arith.constant 0 : index
    %c113 = arith.constant 113 : index
    %64 = vector.load %arg15[%c0_28, %c113] : memref<4x512xbf16, #tpu.memory_space<vmem>>, vector<4x256xbf16>
    %65 = vector.broadcast %40 : vector<1x256xbf16> to vector<4x256xbf16>
    %66 = arith.mulf %64, %65 : vector<4x256xbf16>
    %c2 = arith.constant 2 : index
    %c0_29 = arith.constant 0 : index
    %c0_30 = arith.constant 0 : index
    %67 = vector.load %arg4[%c2, %c0_29, %c0_30] : memref<9x8x4xbf16, #tpu.memory_space<vmem>>, vector<1x8x4xbf16>
    %68 = vector.shape_cast %67 : vector<1x8x4xbf16> to vector<8x4xbf16>
    %cst_31 = arith.constant dense<0.000000e+00> : vector<8x256xf32>
    %69 = tpu.matmul %68, %66, %cst_31 {dimension_numbers = #tpu.dot_dimension_numbers<[1], [0], [0], [1], [0, 0, 1, 1], [], []>} : vector<8x4xbf16>, vector<4x256xbf16>, vector<8x256xf32> -> vector<8x256xf32>
    %70 = arith.addf %63, %69 : vector<8x256xf32>
    %c0_32 = arith.constant 0 : index
    %c127 = arith.constant 127 : index
    %71 = vector.load %arg15[%c0_32, %c127] : memref<4x512xbf16, #tpu.memory_space<vmem>>, vector<4x256xbf16>
    %72 = vector.broadcast %28 : vector<1x256xbf16> to vector<4x256xbf16>
    %73 = arith.mulf %71, %72 : vector<4x256xbf16>
    %c3 = arith.constant 3 : index
    %c0_33 = arith.constant 0 : index
    %c0_34 = arith.constant 0 : index
    %74 = vector.load %arg4[%c3, %c0_33, %c0_34] : memref<9x8x4xbf16, #tpu.memory_space<vmem>>, vector<1x8x4xbf16>
    %75 = vector.shape_cast %74 : vector<1x8x4xbf16> to vector<8x4xbf16>
    %cst_35 = arith.constant dense<0.000000e+00> : vector<8x256xf32>
    %76 = tpu.matmul %75, %73, %cst_35 {dimension_numbers = #tpu.dot_dimension_numbers<[1], [0], [0], [1], [0, 0, 1, 1], [], []>} : vector<8x4xbf16>, vector<4x256xbf16>, vector<8x256xf32> -> vector<8x256xf32>
    %77 = arith.addf %70, %76 : vector<8x256xf32>
    %c0_36 = arith.constant 0 : index
    %c128_37 = arith.constant 128 : index
    %78 = vector.load %arg15[%c0_36, %c128_37] : memref<4x512xbf16, #tpu.memory_space<vmem>>, vector<4x256xbf16>
    %c4 = arith.constant 4 : index
    %c0_38 = arith.constant 0 : index
    %c0_39 = arith.constant 0 : index
    %79 = vector.load %arg4[%c4, %c0_38, %c0_39] : memref<9x8x4xbf16, #tpu.memory_space<vmem>>, vector<1x8x4xbf16>
    %80 = vector.shape_cast %79 : vector<1x8x4xbf16> to vector<8x4xbf16>
    %cst_40 = arith.constant dense<0.000000e+00> : vector<8x256xf32>
    %81 = tpu.matmul %80, %78, %cst_40 {dimension_numbers = #tpu.dot_dimension_numbers<[1], [0], [0], [1], [0, 0, 1, 1], [], []>} : vector<8x4xbf16>, vector<4x256xbf16>, vector<8x256xf32> -> vector<8x256xf32>
    %82 = arith.addf %77, %81 : vector<8x256xf32>
    %c0_41 = arith.constant 0 : index
    %c129 = arith.constant 129 : index
    %83 = vector.load %arg15[%c0_41, %c129] : memref<4x512xbf16, #tpu.memory_space<vmem>>, vector<4x256xbf16>
    %84 = vector.broadcast %40 : vector<1x256xbf16> to vector<4x256xbf16>
    %85 = arith.mulf %83, %84 : vector<4x256xbf16>
    %c5 = arith.constant 5 : index
    %c0_42 = arith.constant 0 : index
    %c0_43 = arith.constant 0 : index
    %86 = vector.load %arg4[%c5, %c0_42, %c0_43] : memref<9x8x4xbf16, #tpu.memory_space<vmem>>, vector<1x8x4xbf16>
    %87 = vector.shape_cast %86 : vector<1x8x4xbf16> to vector<8x4xbf16>
    %cst_44 = arith.constant dense<0.000000e+00> : vector<8x256xf32>
    %88 = tpu.matmul %87, %85, %cst_44 {dimension_numbers = #tpu.dot_dimension_numbers<[1], [0], [0], [1], [0, 0, 1, 1], [], []>} : vector<8x4xbf16>, vector<4x256xbf16>, vector<8x256xf32> -> vector<8x256xf32>
    %89 = arith.addf %82, %88 : vector<8x256xf32>
    %c0_45 = arith.constant 0 : index
    %c143 = arith.constant 143 : index
    %90 = vector.load %arg15[%c0_45, %c143] : memref<4x512xbf16, #tpu.memory_space<vmem>>, vector<4x256xbf16>
    %91 = vector.broadcast %28 : vector<1x256xbf16> to vector<4x256xbf16>
    %92 = arith.mulf %90, %91 : vector<4x256xbf16>
    %c6 = arith.constant 6 : index
    %c0_46 = arith.constant 0 : index
    %c0_47 = arith.constant 0 : index
    %93 = vector.load %arg4[%c6, %c0_46, %c0_47] : memref<9x8x4xbf16, #tpu.memory_space<vmem>>, vector<1x8x4xbf16>
    %94 = vector.shape_cast %93 : vector<1x8x4xbf16> to vector<8x4xbf16>
    %cst_48 = arith.constant dense<0.000000e+00> : vector<8x256xf32>
    %95 = tpu.matmul %94, %92, %cst_48 {dimension_numbers = #tpu.dot_dimension_numbers<[1], [0], [0], [1], [0, 0, 1, 1], [], []>} : vector<8x4xbf16>, vector<4x256xbf16>, vector<8x256xf32> -> vector<8x256xf32>
    %96 = arith.addf %89, %95 : vector<8x256xf32>
    %c0_49 = arith.constant 0 : index
    %c144 = arith.constant 144 : index
    %97 = vector.load %arg15[%c0_49, %c144] : memref<4x512xbf16, #tpu.memory_space<vmem>>, vector<4x256xbf16>
    %c7 = arith.constant 7 : index
    %c0_50 = arith.constant 0 : index
    %c0_51 = arith.constant 0 : index
    %98 = vector.load %arg4[%c7, %c0_50, %c0_51] : memref<9x8x4xbf16, #tpu.memory_space<vmem>>, vector<1x8x4xbf16>
    %99 = vector.shape_cast %98 : vector<1x8x4xbf16> to vector<8x4xbf16>
    %cst_52 = arith.constant dense<0.000000e+00> : vector<8x256xf32>
    %100 = tpu.matmul %99, %97, %cst_52 {dimension_numbers = #tpu.dot_dimension_numbers<[1], [0], [0], [1], [0, 0, 1, 1], [], []>} : vector<8x4xbf16>, vector<4x256xbf16>, vector<8x256xf32> -> vector<8x256xf32>
    %101 = arith.addf %96, %100 : vector<8x256xf32>
    %c0_53 = arith.constant 0 : index
    %c145 = arith.constant 145 : index
    %102 = vector.load %arg15[%c0_53, %c145] : memref<4x512xbf16, #tpu.memory_space<vmem>>, vector<4x256xbf16>
    %103 = vector.broadcast %40 : vector<1x256xbf16> to vector<4x256xbf16>
    %104 = arith.mulf %102, %103 : vector<4x256xbf16>
    %c8 = arith.constant 8 : index
    %c0_54 = arith.constant 0 : index
    %c0_55 = arith.constant 0 : index
    %105 = vector.load %arg4[%c8, %c0_54, %c0_55] : memref<9x8x4xbf16, #tpu.memory_space<vmem>>, vector<1x8x4xbf16>
    %106 = vector.shape_cast %105 : vector<1x8x4xbf16> to vector<8x4xbf16>
    %cst_56 = arith.constant dense<0.000000e+00> : vector<8x256xf32>
    %107 = tpu.matmul %106, %104, %cst_56 {dimension_numbers = #tpu.dot_dimension_numbers<[1], [0], [0], [1], [0, 0, 1, 1], [], []>} : vector<8x4xbf16>, vector<4x256xbf16>, vector<8x256xf32> -> vector<8x256xf32>
    %108 = arith.addf %101, %107 : vector<8x256xf32>
    %c0_57 = arith.constant 0 : index
    %c0_58 = arith.constant 0 : index
    %c0_59 = arith.constant 0 : index
    %109 = vector.load %arg3[%c0_57, %c0_58, %c0_59] : memref<1x8x1xf32, #tpu.memory_space<vmem>>, vector<1x8x1xf32>
    %110 = vector.shape_cast %109 : vector<1x8x1xf32> to vector<8x1xf32>
    %111 = vector.broadcast %110 : vector<8x1xf32> to vector<8x256xf32>
    %112 = arith.mulf %108, %111 : vector<8x256xf32>
    %c0_60 = arith.constant 0 : index
    %c0_61 = arith.constant 0 : index
    %113 = vector.load %arg5[%c0_60, %c0_61] : memref<8x1xf32, #tpu.memory_space<vmem>>, vector<8x1xf32>
    %114 = vector.broadcast %113 : vector<8x1xf32> to vector<8x256xf32>
    %115 = arith.addf %112, %114 : vector<8x256xf32>
    %cst_62 = arith.constant 0.000000e+00 : f32
    %116 = vector.broadcast %cst_62 : f32 to vector<8x256xf32>
    %117 = arith.cmpf oge, %115, %116 : vector<8x256xf32>
    %cst_63 = arith.constant 2.000000e-01 : f32
    %118 = vector.broadcast %cst_63 : f32 to vector<8x256xf32>
    %119 = arith.mulf %118, %115 : vector<8x256xf32>
    %120 = arith.select %117, %115, %119 : vector<8x256xi1>, vector<8x256xf32>
    %c0_64 = arith.constant 0 : index
    %c0_65 = arith.constant 0 : index
    %c0_66 = arith.constant 0 : index
    %121 = vector.load %arg6[%c0_64, %c0_65, %c0_66] : memref<1x8x1xf32, #tpu.memory_space<vmem>>, vector<1x8x1xf32>
    %122 = vector.shape_cast %121 : vector<1x8x1xf32> to vector<8x1xf32>
    %123 = vector.broadcast %122 : vector<8x1xf32> to vector<8x256xf32>
    %124 = arith.mulf %120, %123 : vector<8x256xf32>
    %125 = arith.truncf %124 : vector<8x256xf32> to vector<8x256xbf16>
    %cst_67 = arith.constant 0.000000e+00 : bf16
    %126 = vector.broadcast %cst_67 : bf16 to vector<8x128xbf16>
    %c0_68 = arith.constant 0 : index
    %c0_69 = arith.constant 0 : index
    %127 = vector.load %arg16[%c0_68, %c0_69] : memref<8x512xbf16, #tpu.memory_space<vmem>>, vector<8x128xbf16>
    tpu.vector_store %arg16[%c0_68, %c0_69], %126 {strides = array<i32>} : memref<8x512xbf16, #tpu.memory_space<vmem>>, vector<8x128xbf16>,
    %c0_70 = arith.constant 0 : index
    %c384_71 = arith.constant 384 : index
    %128 = vector.load %arg16[%c0_70, %c384_71] : memref<8x512xbf16, #tpu.memory_space<vmem>>, vector<8x128xbf16>
    tpu.vector_store %arg16[%c0_70, %c384_71], %126 {strides = array<i32>} : memref<8x512xbf16, #tpu.memory_space<vmem>>, vector<8x128xbf16>,
    %c0_72 = arith.constant 0 : index
    %c128_73 = arith.constant 128 : index
    %129 = vector.load %arg16[%c0_72, %c128_73] : memref<8x512xbf16, #tpu.memory_space<vmem>>, vector<8x256xbf16>
    tpu.vector_store %arg16[%c0_72, %c128_73], %125 {strides = array<i32>} : memref<8x512xbf16, #tpu.memory_space<vmem>>, vector<8x256xbf16>,
    %c0_74 = arith.constant 0 : index
    %c111_75 = arith.constant 111 : index
    %130 = vector.load %arg16[%c0_74, %c111_75] : memref<8x512xbf16, #tpu.memory_space<vmem>>, vector<8x256xbf16>
    %131 = vector.broadcast %28 : vector<1x256xbf16> to vector<8x256xbf16>
    %132 = arith.mulf %130, %131 : vector<8x256xbf16>
    %c0_76 = arith.constant 0 : index
    %c0_77 = arith.constant 0 : index
    %c0_78 = arith.constant 0 : index
    %133 = vector.load %arg8[%c0_76, %c0_77, %c0_78] : memref<9x8x8xbf16, #tpu.memory_space<vmem>>, vector<1x8x8xbf16>
    %134 = vector.shape_cast %133 : vector<1x8x8xbf16> to vector<8x8xbf16>
    %cst_79 = arith.constant dense<0.000000e+00> : vector<8x256xf32>
    %135 = tpu.matmul %134, %132, %cst_79 {dimension_numbers = #tpu.dot_dimension_numbers<[1], [0], [0], [1], [0, 0, 1, 1], [], []>} : vector<8x8xbf16>, vector<8x256xbf16>, vector<8x256xf32> -> vector<8x256xf32>
    %c0_80 = arith.constant 0 : index
    %c112_81 = arith.constant 112 : index
    %136 = vector.load %arg16[%c0_80, %c112_81] : memref<8x512xbf16, #tpu.memory_space<vmem>>, vector<8x256xbf16>
    %c1_82 = arith.constant 1 : index
    %c0_83 = arith.constant 0 : index
    %c0_84 = arith.constant 0 : index
    %137 = vector.load %arg8[%c1_82, %c0_83, %c0_84] : memref<9x8x8xbf16, #tpu.memory_space<vmem>>, vector<1x8x8xbf16>
    %138 = vector.shape_cast %137 : vector<1x8x8xbf16> to vector<8x8xbf16>
    %cst_85 = arith.constant dense<0.000000e+00> : vector<8x256xf32>
    %139 = tpu.matmul %138, %136, %cst_85 {dimension_numbers = #tpu.dot_dimension_numbers<[1], [0], [0], [1], [0, 0, 1, 1], [], []>} : vector<8x8xbf16>, vector<8x256xbf16>, vector<8x256xf32> -> vector<8x256xf32>
    %140 = arith.addf %135, %139 : vector<8x256xf32>
    %c0_86 = arith.constant 0 : index
    %c113_87 = arith.constant 113 : index
    %141 = vector.load %arg16[%c0_86, %c113_87] : memref<8x512xbf16, #tpu.memory_space<vmem>>, vector<8x256xbf16>
    %142 = vector.broadcast %40 : vector<1x256xbf16> to vector<8x256xbf16>
    %143 = arith.mulf %141, %142 : vector<8x256xbf16>
    %c2_88 = arith.constant 2 : index
    %c0_89 = arith.constant 0 : index
    %c0_90 = arith.constant 0 : index
    %144 = vector.load %arg8[%c2_88, %c0_89, %c0_90] : memref<9x8x8xbf16, #tpu.memory_space<vmem>>, vector<1x8x8xbf16>
    %145 = vector.shape_cast %144 : vector<1x8x8xbf16> to vector<8x8xbf16>
    %cst_91 = arith.constant dense<0.000000e+00> : vector<8x256xf32>
    %146 = tpu.matmul %145, %143, %cst_91 {dimension_numbers = #tpu.dot_dimension_numbers<[1], [0], [0], [1], [0, 0, 1, 1], [], []>} : vector<8x8xbf16>, vector<8x256xbf16>, vector<8x256xf32> -> vector<8x256xf32>
    %147 = arith.addf %140, %146 : vector<8x256xf32>
    %c0_92 = arith.constant 0 : index
    %c127_93 = arith.constant 127 : index
    %148 = vector.load %arg16[%c0_92, %c127_93] : memref<8x512xbf16, #tpu.memory_space<vmem>>, vector<8x256xbf16>
    %149 = vector.broadcast %28 : vector<1x256xbf16> to vector<8x256xbf16>
    %150 = arith.mulf %148, %149 : vector<8x256xbf16>
    %c3_94 = arith.constant 3 : index
    %c0_95 = arith.constant 0 : index
    %c0_96 = arith.constant 0 : index
    %151 = vector.load %arg8[%c3_94, %c0_95, %c0_96] : memref<9x8x8xbf16, #tpu.memory_space<vmem>>, vector<1x8x8xbf16>
    %152 = vector.shape_cast %151 : vector<1x8x8xbf16> to vector<8x8xbf16>
    %cst_97 = arith.constant dense<0.000000e+00> : vector<8x256xf32>
    %153 = tpu.matmul %152, %150, %cst_97 {dimension_numbers = #tpu.dot_dimension_numbers<[1], [0], [0], [1], [0, 0, 1, 1], [], []>} : vector<8x8xbf16>, vector<8x256xbf16>, vector<8x256xf32> -> vector<8x256xf32>
    %154 = arith.addf %147, %153 : vector<8x256xf32>
    %c0_98 = arith.constant 0 : index
    %c128_99 = arith.constant 128 : index
    %155 = vector.load %arg16[%c0_98, %c128_99] : memref<8x512xbf16, #tpu.memory_space<vmem>>, vector<8x256xbf16>
    %c4_100 = arith.constant 4 : index
    %c0_101 = arith.constant 0 : index
    %c0_102 = arith.constant 0 : index
    %156 = vector.load %arg8[%c4_100, %c0_101, %c0_102] : memref<9x8x8xbf16, #tpu.memory_space<vmem>>, vector<1x8x8xbf16>
    %157 = vector.shape_cast %156 : vector<1x8x8xbf16> to vector<8x8xbf16>
    %cst_103 = arith.constant dense<0.000000e+00> : vector<8x256xf32>
    %158 = tpu.matmul %157, %155, %cst_103 {dimension_numbers = #tpu.dot_dimension_numbers<[1], [0], [0], [1], [0, 0, 1, 1], [], []>} : vector<8x8xbf16>, vector<8x256xbf16>, vector<8x256xf32> -> vector<8x256xf32>
    %159 = arith.addf %154, %158 : vector<8x256xf32>
    %c0_104 = arith.constant 0 : index
    %c129_105 = arith.constant 129 : index
    %160 = vector.load %arg16[%c0_104, %c129_105] : memref<8x512xbf16, #tpu.memory_space<vmem>>, vector<8x256xbf16>
    %161 = vector.broadcast %40 : vector<1x256xbf16> to vector<8x256xbf16>
    %162 = arith.mulf %160, %161 : vector<8x256xbf16>
    %c5_106 = arith.constant 5 : index
    %c0_107 = arith.constant 0 : index
    %c0_108 = arith.constant 0 : index
    %163 = vector.load %arg8[%c5_106, %c0_107, %c0_108] : memref<9x8x8xbf16, #tpu.memory_space<vmem>>, vector<1x8x8xbf16>
    %164 = vector.shape_cast %163 : vector<1x8x8xbf16> to vector<8x8xbf16>
    %cst_109 = arith.constant dense<0.000000e+00> : vector<8x256xf32>
    %165 = tpu.matmul %164, %162, %cst_109 {dimension_numbers = #tpu.dot_dimension_numbers<[1], [0], [0], [1], [0, 0, 1, 1], [], []>} : vector<8x8xbf16>, vector<8x256xbf16>, vector<8x256xf32> -> vector<8x256xf32>
    %166 = arith.addf %159, %165 : vector<8x256xf32>
    %c0_110 = arith.constant 0 : index
    %c143_111 = arith.constant 143 : index
    %167 = vector.load %arg16[%c0_110, %c143_111] : memref<8x512xbf16, #tpu.memory_space<vmem>>, vector<8x256xbf16>
    %168 = vector.broadcast %28 : vector<1x256xbf16> to vector<8x256xbf16>
    %169 = arith.mulf %167, %168 : vector<8x256xbf16>
    %c6_112 = arith.constant 6 : index
    %c0_113 = arith.constant 0 : index
    %c0_114 = arith.constant 0 : index
    %170 = vector.load %arg8[%c6_112, %c0_113, %c0_114] : memref<9x8x8xbf16, #tpu.memory_space<vmem>>, vector<1x8x8xbf16>
    %171 = vector.shape_cast %170 : vector<1x8x8xbf16> to vector<8x8xbf16>
    %cst_115 = arith.constant dense<0.000000e+00> : vector<8x256xf32>
    %172 = tpu.matmul %171, %169, %cst_115 {dimension_numbers = #tpu.dot_dimension_numbers<[1], [0], [0], [1], [0, 0, 1, 1], [], []>} : vector<8x8xbf16>, vector<8x256xbf16>, vector<8x256xf32> -> vector<8x256xf32>
    %173 = arith.addf %166, %172 : vector<8x256xf32>
    %c0_116 = arith.constant 0 : index
    %c144_117 = arith.constant 144 : index
    %174 = vector.load %arg16[%c0_116, %c144_117] : memref<8x512xbf16, #tpu.memory_space<vmem>>, vector<8x256xbf16>
    %c7_118 = arith.constant 7 : index
    %c0_119 = arith.constant 0 : index
    %c0_120 = arith.constant 0 : index
    %175 = vector.load %arg8[%c7_118, %c0_119, %c0_120] : memref<9x8x8xbf16, #tpu.memory_space<vmem>>, vector<1x8x8xbf16>
    %176 = vector.shape_cast %175 : vector<1x8x8xbf16> to vector<8x8xbf16>
    %cst_121 = arith.constant dense<0.000000e+00> : vector<8x256xf32>
    %177 = tpu.matmul %176, %174, %cst_121 {dimension_numbers = #tpu.dot_dimension_numbers<[1], [0], [0], [1], [0, 0, 1, 1], [], []>} : vector<8x8xbf16>, vector<8x256xbf16>, vector<8x256xf32> -> vector<8x256xf32>
    %178 = arith.addf %173, %177 : vector<8x256xf32>
    %c0_122 = arith.constant 0 : index
    %c145_123 = arith.constant 145 : index
    %179 = vector.load %arg16[%c0_122, %c145_123] : memref<8x512xbf16, #tpu.memory_space<vmem>>, vector<8x256xbf16>
    %180 = vector.broadcast %40 : vector<1x256xbf16> to vector<8x256xbf16>
    %181 = arith.mulf %179, %180 : vector<8x256xbf16>
    %c8_124 = arith.constant 8 : index
    %c0_125 = arith.constant 0 : index
    %c0_126 = arith.constant 0 : index
    %182 = vector.load %arg8[%c8_124, %c0_125, %c0_126] : memref<9x8x8xbf16, #tpu.memory_space<vmem>>, vector<1x8x8xbf16>
    %183 = vector.shape_cast %182 : vector<1x8x8xbf16> to vector<8x8xbf16>
    %cst_127 = arith.constant dense<0.000000e+00> : vector<8x256xf32>
    %184 = tpu.matmul %183, %181, %cst_127 {dimension_numbers = #tpu.dot_dimension_numbers<[1], [0], [0], [1], [0, 0, 1, 1], [], []>} : vector<8x8xbf16>, vector<8x256xbf16>, vector<8x256xf32> -> vector<8x256xf32>
    %185 = arith.addf %178, %184 : vector<8x256xf32>
    %c0_128 = arith.constant 0 : index
    %c0_129 = arith.constant 0 : index
    %c0_130 = arith.constant 0 : index
    %186 = vector.load %arg7[%c0_128, %c0_129, %c0_130] : memref<1x8x1xf32, #tpu.memory_space<vmem>>, vector<1x8x1xf32>
    %187 = vector.shape_cast %186 : vector<1x8x1xf32> to vector<8x1xf32>
    %188 = vector.broadcast %187 : vector<8x1xf32> to vector<8x256xf32>
    %189 = arith.mulf %185, %188 : vector<8x256xf32>
    %c0_131 = arith.constant 0 : index
    %c0_132 = arith.constant 0 : index
    %190 = vector.load %arg9[%c0_131, %c0_132] : memref<8x1xf32, #tpu.memory_space<vmem>>, vector<8x1xf32>
    %191 = vector.broadcast %190 : vector<8x1xf32> to vector<8x256xf32>
    %192 = arith.addf %189, %191 : vector<8x256xf32>
    %cst_133 = arith.constant 0.000000e+00 : f32
    %193 = vector.broadcast %cst_133 : f32 to vector<8x256xf32>
    %194 = arith.cmpf oge, %192, %193 : vector<8x256xf32>
    %cst_134 = arith.constant 2.000000e-01 : f32
    %195 = vector.broadcast %cst_134 : f32 to vector<8x256xf32>
    %196 = arith.mulf %195, %192 : vector<8x256xf32>
    %197 = arith.select %194, %192, %196 : vector<8x256xi1>, vector<8x256xf32>
    %198 = vector.shape_cast %197 : vector<8x256xf32> to vector<1x8x256xf32>
    %c0_135 = arith.constant 0 : index
    %c0_136 = arith.constant 0 : index
    %c0_137 = arith.constant 0 : index
    %199 = vector.load %arg13[%c0_135, %c0_136, %c0_137] : memref<1x8x256xf32, #tpu.memory_space<vmem>>, vector<1x8x256xf32>
    tpu.vector_store %arg13[%c0_135, %c0_136, %c0_137], %198 {strides = array<i32>} : memref<1x8x256xf32, #tpu.memory_space<vmem>>, vector<1x8x256xf32>,
    %c0_138 = arith.constant 0 : index
    %c0_139 = arith.constant 0 : index
    %c0_140 = arith.constant 0 : index
    %200 = vector.load %arg10[%c0_138, %c0_139, %c0_140] : memref<1x4x8xbf16, #tpu.memory_space<vmem>>, vector<1x4x8xbf16>
    %201 = vector.shape_cast %200 : vector<1x4x8xbf16> to vector<4x8xbf16>
    %202 = arith.truncf %197 : vector<8x256xf32> to vector<8x256xbf16>
    %cst_141 = arith.constant dense<0.000000e+00> : vector<4x256xf32>
    %203 = tpu.matmul %201, %202, %cst_141 {dimension_numbers = #tpu.dot_dimension_numbers<[1], [0], [0], [1], [0, 0, 1, 1], [], []>} : vector<4x8xbf16>, vector<8x256xbf16>, vector<4x256xf32> -> vector<4x256xf32>
    %c0_142 = arith.constant 0 : index
    %c0_143 = arith.constant 0 : index
    %204 = vector.load %arg11[%c0_142, %c0_143] : memref<4x1xf32, #tpu.memory_space<vmem>>, vector<4x1xf32>
    %205 = vector.broadcast %204 : vector<4x1xf32> to vector<4x256xf32>
    %206 = arith.addf %203, %205 : vector<4x256xf32>
    %c0_144 = arith.constant 0 : index
    %c0_145 = arith.constant 0 : index
    %c0_146 = arith.constant 0 : index
    %207 = vector.load %arg12[%c0_144, %c0_145, %c0_146] : memref<1x4x256xf32, #tpu.memory_space<vmem>>, vector<1x4x256xf32>
    %208 = vector.shape_cast %207 : vector<1x4x256xf32> to vector<4x256xf32>
    %209 = arith.addf %206, %208 : vector<4x256xf32>
    %210 = vector.extract_strided_slice %209 {offsets = [0, 0], sizes = [3, 256], strides = [1, 1]} : vector<4x256xf32> to vector<3x256xf32>
    %c0_147 = arith.constant 0 : index
    %c0_148 = arith.constant 0 : index
    %c0_149 = arith.constant 0 : index
    %211 = vector.load %arg14[%c0_147, %c0_148, %c0_149] : memref<1x4x256xf32, #tpu.memory_space<vmem>>, vector<1x3x256xf32>
    %212 = vector.shape_cast %211 : vector<1x3x256xf32> to vector<3x256xf32>
    %213 = vector.shape_cast %210 : vector<3x256xf32> to vector<1x3x256xf32>
    tpu.vector_store %arg14[%c0_147, %c0_148, %c0_149], %213 {strides = array<i32>} : memref<1x4x256xf32, #tpu.memory_space<vmem>>, vector<1x3x256xf32>,
    %214 = vector.extract_strided_slice %209 {offsets = [3, 0], sizes = [1, 256], strides = [1, 1]} : vector<4x256xf32> to vector<1x256xf32>
    %215 = arith.negf %214 : vector<1x256xf32>
    %216 = math.exp %215 : vector<1x256xf32>
    %cst_150 = arith.constant 1.000000e+00 : f32
    %217 = vector.broadcast %cst_150 : f32 to vector<1x256xf32>
    %218 = arith.addf %217, %216 : vector<1x256xf32>
    %219 = arith.divf %217, %218 : vector<1x256xf32>
    %c0_151 = arith.constant 0 : index
    %c3_152 = arith.constant 3 : index
    %c0_153 = arith.constant 0 : index
    %220 = vector.load %arg14[%c0_151, %c3_152, %c0_153] : memref<1x4x256xf32, #tpu.memory_space<vmem>>, vector<1x1x256xf32>
    %221 = vector.shape_cast %220 : vector<1x1x256xf32> to vector<1x256xf32>
    %222 = vector.shape_cast %219 : vector<1x256xf32> to vector<1x1x256xf32>
    tpu.vector_store %arg14[%c0_151, %c3_152, %c0_153], %222 {strides = array<i32>} : memref<1x4x256xf32, #tpu.memory_space<vmem>>, vector<1x1x256xf32>,
    return
  }
  func.func @transform_0(%arg0: i32) -> (i32, i32, i32) {
    %c0_i32 = arith.constant 0 : i32
    %c0_i32_0 = arith.constant 0 : i32
    %c0_i32_1 = arith.constant 0 : i32
    return %arg0, %c0_i32, %c0_i32_0 : i32, i32, i32
  }
  func.func @transform_1(%arg0: i32) -> (i32, i32, i32) {
    %c0_i32 = arith.constant 0 : i32
    %c0_i32_0 = arith.constant 0 : i32
    %c0_i32_1 = arith.constant 0 : i32
    return %arg0, %c0_i32, %c0_i32_0 : i32, i32, i32
  }
  func.func @transform_2(%arg0: i32) -> (i32, i32, i32) {
    %c0_i32 = arith.constant 0 : i32
    %c0_i32_0 = arith.constant 0 : i32
    %c0_i32_1 = arith.constant 0 : i32
    return %arg0, %c0_i32, %c0_i32_0 : i32, i32, i32
  }
  func.func @transform_3(%arg0: i32) -> (i32, i32, i32) {
    %c0_i32 = arith.constant 0 : i32
    %c0_i32_0 = arith.constant 0 : i32
    %c0_i32_1 = arith.constant 0 : i32
    %c0_i32_2 = arith.constant 0 : i32
    return %c0_i32, %c0_i32_0, %c0_i32_1 : i32, i32, i32
  }
  func.func @transform_4(%arg0: i32) -> (i32, i32) {
    %c0_i32 = arith.constant 0 : i32
    %c0_i32_0 = arith.constant 0 : i32
    %c0_i32_1 = arith.constant 0 : i32
    return %c0_i32, %c0_i32_0 : i32, i32
  }
  func.func @transform_5(%arg0: i32) -> (i32, i32, i32) {
    %c0_i32 = arith.constant 0 : i32
    %c0_i32_0 = arith.constant 0 : i32
    %c0_i32_1 = arith.constant 0 : i32
    return %arg0, %c0_i32, %c0_i32_0 : i32, i32, i32
  }
  func.func @transform_6(%arg0: i32) -> (i32, i32, i32) {
    %c0_i32 = arith.constant 0 : i32
    %c0_i32_0 = arith.constant 0 : i32
    %c0_i32_1 = arith.constant 0 : i32
    return %arg0, %c0_i32, %c0_i32_0 : i32, i32, i32
  }
  func.func @transform_7(%arg0: i32) -> (i32, i32, i32) {
    %c0_i32 = arith.constant 0 : i32
    %c0_i32_0 = arith.constant 0 : i32
    %c0_i32_1 = arith.constant 0 : i32
    %c0_i32_2 = arith.constant 0 : i32
    return %c0_i32, %c0_i32_0, %c0_i32_1 : i32, i32, i32
  }
  func.func @transform_8(%arg0: i32) -> (i32, i32) {
    %c0_i32 = arith.constant 0 : i32
    %c0_i32_0 = arith.constant 0 : i32
    %c0_i32_1 = arith.constant 0 : i32
    return %c0_i32, %c0_i32_0 : i32, i32
  }
  func.func @transform_9(%arg0: i32) -> (i32, i32, i32) {
    %c0_i32 = arith.constant 0 : i32
    %c0_i32_0 = arith.constant 0 : i32
    %c0_i32_1 = arith.constant 0 : i32
    return %arg0, %c0_i32, %c0_i32_0 : i32, i32, i32
  }
  func.func @transform_10(%arg0: i32) -> (i32, i32) {
    %c0_i32 = arith.constant 0 : i32
    %c0_i32_0 = arith.constant 0 : i32
    %c0_i32_1 = arith.constant 0 : i32
    return %c0_i32, %c0_i32_0 : i32, i32
  }
  func.func @transform_11(%arg0: i32) -> (i32, i32, i32) {
    %c0_i32 = arith.constant 0 : i32
    %c0_i32_0 = arith.constant 0 : i32
    %c0_i32_1 = arith.constant 0 : i32
    return %arg0, %c0_i32, %c0_i32_0 : i32, i32, i32
  }
  func.func @transform_12(%arg0: i32) -> (i32, i32, i32) {
    %c0_i32 = arith.constant 0 : i32
    %c0_i32_0 = arith.constant 0 : i32
    %c0_i32_1 = arith.constant 0 : i32
    return %arg0, %c0_i32, %c0_i32_0 : i32, i32, i32
  }
  func.func @transform_13(%arg0: i32) -> (i32, i32, i32) {
    %c0_i32 = arith.constant 0 : i32
    %c0_i32_0 = arith.constant 0 : i32
    %c0_i32_1 = arith.constant 0 : i32
    return %arg0, %c0_i32, %c0_i32_0 : i32, i32, i32
  }
}

</mosaic_0001>

<llo_original>
// kernel: tpu_custom_call.1
$region0: #{tpu_custom_call.1}
  #allocation0 [shape = 'u32[]', space=smem, size = 0x4, offset = 0x4, fixed_abs, tag = 'smem constant byte address 0x4 - core index']
  #allocation1 [shape = 'u32[144,128]{1,0:T(1,128)}', space=vmem, size = 0x12000, scoped, tag = 'internal scratch']
  #allocation2 [shape = 'bf16[4,512]{1,0:T(4,128)(2,1)}', space=vmem, size = 0x1000, scoped, tag = 'scratch operand']
  #allocation3 [shape = 'bf16[8,512]{1,0:T(8,128)(2,1)}', space=vmem, size = 0x2000, scoped, tag = 'scratch operand']
  %s0 = inlined_call_operand.vmem [shape: bf16[2,4,256], index: 0, kind: input, shape index: {}]
  %s1 = inlined_call_operand.vmem [shape: f32[2,4,1], index: 1, kind: input, shape index: {}]
  %s2 = inlined_call_operand.vmem [shape: f32[2,8,1], index: 2, kind: input, shape index: {}]
  %s3 = inlined_call_operand.vmem [shape: bf16[9,8,4], index: 3, kind: input, shape index: {}]
  %s4 = inlined_call_operand.vmem [shape: f32[8,1], index: 4, kind: input, shape index: {}]
  %s5 = inlined_call_operand.vmem [shape: f32[2,8,1], index: 5, kind: input, shape index: {}]
  %s6 = inlined_call_operand.vmem [shape: f32[2,8,1], index: 6, kind: input, shape index: {}]
  %s7 = inlined_call_operand.vmem [shape: bf16[9,8,8], index: 7, kind: input, shape index: {}]
  %s8 = inlined_call_operand.vmem [shape: f32[8,1], index: 8, kind: input, shape index: {}]
  %s9 = inlined_call_operand.vmem [shape: bf16[2,4,8], index: 9, kind: input, shape index: {}]
  %s10 = inlined_call_operand.vmem [shape: f32[4,1], index: 10, kind: input, shape index: {}]
  %s11 = inlined_call_operand.vmem [shape: f32[2,4,256], index: 11, kind: input, shape index: {}]
  %s12 = inlined_call_operand.hbm [shape: f32[2,8,256], index: 12, kind: output, shape index: {0}]
  %s13 = inlined_call_operand.hbm [shape: f32[2,4,256], index: 13, kind: output, shape index: {1}]
  %14 = xla_tuple %s12, %s13
  %s15 = sld [smem:[#allocation0]]
  $region89: #{tpu_custom_call.1} parent=0
    _
  %s17 = ssub.s32 1, %s15
  %s18 = scalar_select 0, %s17, %s15
  $region1: #{tpu_custom_call.1} parent=0
    #allocation4 [shape = 'u8[16384]{0}', space=vmem, size = 0x4000, scoped, tag = 'output window, operand 0']
    #allocation5 [shape = 's32[2]{0}', space=sflag, size = 0x8, scoped, tag = 'scoped memory for tpu_custom_call.1']
    #allocation6 [shape = 'u8[8192]{0}', space=vmem, size = 0x2000, scoped, tag = 'output window, operand 1']
    #allocation7 [shape = 's32[2]{0}', space=sflag, size = 0x8, scoped, tag = 'scoped memory for tpu_custom_call.1']
    %19 = vsyncpa [#allocation5], 0
    %s20 = scalar_lea.sflag [#allocation5], 1
    %21 = vsyncpa %s20, 0
    %22 = vsyncpa [#allocation7], 0
    %s23 = scalar_lea.sflag [#allocation7], 1
    %24 = vsyncpa %s23, 0
    loop: start=0, step=1, limit=4
    $region2: #{tpu_custom_call.1} parent=1 // loop_pre_header
      _
    $region3: #{tpu_custom_call.1} parent=1 // loop_header
      %s26 = sphi 0, %s30
      %p27 = scmp.ge.s32.totalorder %s26, 4
      %s36 = sphi 0, %s38
      %s39 = sphi 0, %s36
      %s40 = sphi 0, %s39
      %s56 = sphi 0, %s40
      %s62 = sphi 0, %s64
      %s65 = sphi 0, %s62
      %s66 = sphi 0, %s65
      %s82 = sphi 0, %s66
      %s88 = sphi 0, %s90
      %s91 = sphi 0, %s88
      %s92 = sphi 0, %s91
      %s108 = sphi 0, %s92
      %s112 = sphi 0, %s112
      %s114 = sphi 0, %s112
      %s115 = sphi 0, %s114
      %s129 = sphi 0, %s115
      %s133 = sphi 0, %s133
      %s135 = sphi 0, %s133
      %s136 = sphi 0, %s135
      %s150 = sphi 0, %s136
      %s156 = sphi 0, %s158
      %s159 = sphi 0, %s156
      %s160 = sphi 0, %s159
      %s176 = sphi 0, %s160
      %s182 = sphi 0, %s184
      %s185 = sphi 0, %s182
      %s186 = sphi 0, %s185
      %s202 = sphi 0, %s186
      %s206 = sphi 0, %s206
      %s208 = sphi 0, %s206
      %s209 = sphi 0, %s208
      %s223 = sphi 0, %s209
      %s227 = sphi 0, %s227
      %s229 = sphi 0, %s227
      %s230 = sphi 0, %s229
      %s244 = sphi 0, %s230
      %s250 = sphi 0, %s252
      %s253 = sphi 0, %s250
      %s254 = sphi 0, %s253
      %s270 = sphi 0, %s254
      %s274 = sphi 0, %s274
      %s276 = sphi 0, %s274
      %s277 = sphi 0, %s276
      %s291 = sphi 0, %s277
      %s297 = sphi 0, %s299
      %s300 = sphi 0, %s297
      %s301 = sphi 0, %s300
      %s317 = sphi 0, %s301
      %s323 = sphi 0, %s325
      %s326 = sphi 0, %s323
      %s327 = sphi 0, %s326
      %s343 = sphi 0, %s327
      %s349 = sphi 0, %s351
      %s352 = sphi 0, %s349
      %s353 = sphi 0, %s352
      %s369 = sphi 0, %s353
    $region4: #{tpu_custom_call.1} parent=1 // loop_header_branch
      %29 = sbr.rel (%p27) target = $region8
    $region5: #{tpu_custom_call.1} parent=1 // loop_body
      %s31 = ssub.s32 %s26, 1
      %s32 = ssub.s32 %s26, 2
      %s33 = sadd.s32 %s26, 1
      %s34 = ssub.s32 %s26, %s33
      %p35 = scmp.eq.s32.totalorder %s34, 0
      %s37 = sadd.s32 %s36, 1
      %s38 = scalar_select %p35, %s36, %s37
      %p41 = pneg %p35
      %p42 = scmp.eq.s32.totalorder %s26, 1
      %p43 = por %p41, %p42
      %p44 = scmp.ne.s32.totalorder %s36, %s39
      %p45 = scmp.eq.s32.totalorder %s26, 0
      %p46 = por %p44, %p45
      %p47 = scmp.ne.s32.totalorder %s36, %s39
      %p48 = scmp.eq.s32.totalorder %s31, 1
      %p49 = por %p47, %p48
      %p50 = scmp.ne.s32.totalorder %s39, %s40
      %p51 = scmp.eq.s32.totalorder %s31, 0
      %p52 = por %p50, %p51
      %p53 = scmp.ne.s32.totalorder %s39, %s40
      %p54 = scmp.eq.s32.totalorder %s32, 1
      %p55 = por %p53, %p54
      %p57 = scmp.ne.s32.totalorder %s40, %s56
      %p58 = scmp.eq.s32.totalorder %s32, 0
      %p59 = por %p57, %p58
      %s60 = ssub.s32 %s26, %s33
      %p61 = scmp.eq.s32.totalorder %s60, 0
      %s63 = sadd.s32 %s62, 1
      %s64 = scalar_select %p61, %s62, %s63
      %p67 = pneg %p61
      %p68 = scmp.eq.s32.totalorder %s26, 1
      %p69 = por %p67, %p68
      %p70 = scmp.ne.s32.totalorder %s62, %s65
      %p71 = scmp.eq.s32.totalorder %s26, 0
      %p72 = por %p70, %p71
      %p73 = scmp.ne.s32.totalorder %s62, %s65
      %p74 = scmp.eq.s32.totalorder %s31, 1
      %p75 = por %p73, %p74
      %p76 = scmp.ne.s32.totalorder %s65, %s66
      %p77 = scmp.eq.s32.totalorder %s31, 0
      %p78 = por %p76, %p77
      %p79 = scmp.ne.s32.totalorder %s65, %s66
      %p80 = scmp.eq.s32.totalorder %s32, 1
      %p81 = por %p79, %p80
      %p83 = scmp.ne.s32.totalorder %s66, %s82
      %p84 = scmp.eq.s32.totalorder %s32, 0
      %p85 = por %p83, %p84
      %s86 = ssub.s32 %s26, %s33
      %p87 = scmp.eq.s32.totalorder %s86, 0
      %s89 = sadd.s32 %s88, 1
      %s90 = scalar_select %p87, %s88, %s89
      %p93 = pneg %p87
      %p94 = scmp.eq.s32.totalorder %s26, 1
      %p95 = por %p93, %p94
      %p96 = scmp.ne.s32.totalorder %s88, %s91
      %p97 = scmp.eq.s32.totalorder %s26, 0
      %p98 = por %p96, %p97
      %p99 = scmp.ne.s32.totalorder %s88, %s91
      %p100 = scmp.eq.s32.totalorder %s31, 1
      %p101 = por %p99, %p100
      %p102 = scmp.ne.s32.totalorder %s91, %s92
      %p103 = scmp.eq.s32.totalorder %s31, 0
      %p104 = por %p102, %p103
      %p105 = scmp.ne.s32.totalorder %s91, %s92
      %p106 = scmp.eq.s32.totalorder %s32, 1
      %p107 = por %p105, %p106
      %p109 = scmp.ne.s32.totalorder %s92, %s108
      %p110 = scmp.eq.s32.totalorder %s32, 0
      %p111 = por %p109, %p110
      %s113 = sadd.s32 %s112, 1
      %p116 = scmp.eq.s32.totalorder %s26, 1
      %p117 = scmp.ne.s32.totalorder %s112, %s114
      %p118 = scmp.eq.s32.totalorder %s26, 0
      %p119 = por %p117, %p118
      %p120 = scmp.ne.s32.totalorder %s112, %s114
      %p121 = scmp.eq.s32.totalorder %s31, 1
      %p122 = por %p120, %p121
      %p123 = scmp.ne.s32.totalorder %s114, %s115
      %p124 = scmp.eq.s32.totalorder %s31, 0
      %p125 = por %p123, %p124
      %p126 = scmp.ne.s32.totalorder %s114, %s115
      %p127 = scmp.eq.s32.totalorder %s32, 1
      %p128 = por %p126, %p127
      %p130 = scmp.ne.s32.totalorder %s115, %s129
      %p131 = scmp.eq.s32.totalorder %s32, 0
      %p132 = por %p130, %p131
      %s134 = sadd.s32 %s133, 1
      %p137 = scmp.eq.s32.totalorder %s26, 1
      %p138 = scmp.ne.s32.totalorder %s133, %s135
      %p139 = scmp.eq.s32.totalorder %s26, 0
      %p140 = por %p138, %p139
      %p141 = scmp.ne.s32.totalorder %s133, %s135
      %p142 = scmp.eq.s32.totalorder %s31, 1
      %p143 = por %p141, %p142
      %p144 = scmp.ne.s32.totalorder %s135, %s136
      %p145 = scmp.eq.s32.totalorder %s31, 0
      %p146 = por %p144, %p145
      %p147 = scmp.ne.s32.totalorder %s135, %s136
      %p148 = scmp.eq.s32.totalorder %s32, 1
      %p149 = por %p147, %p148
      %p151 = scmp.ne.s32.totalorder %s136, %s150
      %p152 = scmp.eq.s32.totalorder %s32, 0
      %p153 = por %p151, %p152
      %s154 = ssub.s32 %s26, %s33
      %p155 = scmp.eq.s32.totalorder %s154, 0
      %s157 = sadd.s32 %s156, 1
      %s158 = scalar_select %p155, %s156, %s157
      %p161 = pneg %p155
      %p162 = scmp.eq.s32.totalorder %s26, 1
      %p163 = por %p161, %p162
      %p164 = scmp.ne.s32.totalorder %s156, %s159
      %p165 = scmp.eq.s32.totalorder %s26, 0
      %p166 = por %p164, %p165
      %p167 = scmp.ne.s32.totalorder %s156, %s159
      %p168 = scmp.eq.s32.totalorder %s31, 1
      %p169 = por %p167, %p168
      %p170 = scmp.ne.s32.totalorder %s159, %s160
      %p171 = scmp.eq.s32.totalorder %s31, 0
      %p172 = por %p170, %p171
      %p173 = scmp.ne.s32.totalorder %s159, %s160
      %p174 = scmp.eq.s32.totalorder %s32, 1
      %p175 = por %p173, %p174
      %p177 = scmp.ne.s32.totalorder %s160, %s176
      %p178 = scmp.eq.s32.totalorder %s32, 0
      %p179 = por %p177, %p178
      %s180 = ssub.s32 %s26, %s33
      %p181 = scmp.eq.s32.totalorder %s180, 0
      %s183 = sadd.s32 %s182, 1
      %s184 = scalar_select %p181, %s182, %s183
      %p187 = pneg %p181
      %p188 = scmp.eq.s32.totalorder %s26, 1
      %p189 = por %p187, %p188
      %p190 = scmp.ne.s32.totalorder %s182, %s185
      %p191 = scmp.eq.s32.totalorder %s26, 0
      %p192 = por %p190, %p191
      %p193 = scmp.ne.s32.totalorder %s182, %s185
      %p194 = scmp.eq.s32.totalorder %s31, 1
      %p195 = por %p193, %p194
      %p196 = scmp.ne.s32.totalorder %s185, %s186
      %p197 = scmp.eq.s32.totalorder %s31, 0
      %p198 = por %p196, %p197
      %p199 = scmp.ne.s32.totalorder %s185, %s186
      %p200 = scmp.eq.s32.totalorder %s32, 1
      %p201 = por %p199, %p200
      %p203 = scmp.ne.s32.totalorder %s186, %s202
      %p204 = scmp.eq.s32.totalorder %s32, 0
      %p205 = por %p203, %p204
      %s207 = sadd.s32 %s206, 1
      %p210 = scmp.eq.s32.totalorder %s26, 1
      %p211 = scmp.ne.s32.totalorder %s206, %s208
      %p212 = scmp.eq.s32.totalorder %s26, 0
      %p213 = por %p211, %p212
      %p214 = scmp.ne.s32.totalorder %s206, %s208
      %p215 = scmp.eq.s32.totalorder %s31, 1
      %p216 = por %p214, %p215
      %p217 = scmp.ne.s32.totalorder %s208, %s209
      %p218 = scmp.eq.s32.totalorder %s31, 0
      %p219 = por %p217, %p218
      %p220 = scmp.ne.s32.totalorder %s208, %s209
      %p221 = scmp.eq.s32.totalorder %s32, 1
      %p222 = por %p220, %p221
      %p224 = scmp.ne.s32.totalorder %s209, %s223
      %p225 = scmp.eq.s32.totalorder %s32, 0
      %p226 = por %p224, %p225
      %s228 = sadd.s32 %s227, 1
      %p231 = scmp.eq.s32.totalorder %s26, 1
      %p232 = scmp.ne.s32.totalorder %s227, %s229
      %p233 = scmp.eq.s32.totalorder %s26, 0
      %p234 = por %p232, %p233
      %p235 = scmp.ne.s32.totalorder %s227, %s229
      %p236 = scmp.eq.s32.totalorder %s31, 1
      %p237 = por %p235, %p236
      %p238 = scmp.ne.s32.totalorder %s229, %s230
      %p239 = scmp.eq.s32.totalorder %s31, 0
      %p240 = por %p238, %p239
      %p241 = scmp.ne.s32.totalorder %s229, %s230
      %p242 = scmp.eq.s32.totalorder %s32, 1
      %p243 = por %p241, %p242
      %p245 = scmp.ne.s32.totalorder %s230, %s244
      %p246 = scmp.eq.s32.totalorder %s32, 0
      %p247 = por %p245, %p246
      %s248 = ssub.s32 %s26, %s33
      %p249 = scmp.eq.s32.totalorder %s248, 0
      %s251 = sadd.s32 %s250, 1
      %s252 = scalar_select %p249, %s250, %s251
      %p255 = pneg %p249
      %p256 = scmp.eq.s32.totalorder %s26, 1
      %p257 = por %p255, %p256
      %p258 = scmp.ne.s32.totalorder %s250, %s253
      %p259 = scmp.eq.s32.totalorder %s26, 0
      %p260 = por %p258, %p259
      %p261 = scmp.ne.s32.totalorder %s250, %s253
      %p262 = scmp.eq.s32.totalorder %s31, 1
      %p263 = por %p261, %p262
      %p264 = scmp.ne.s32.totalorder %s253, %s254
      %p265 = scmp.eq.s32.totalorder %s31, 0
      %p266 = por %p264, %p265
      %p267 = scmp.ne.s32.totalorder %s253, %s254
      %p268 = scmp.eq.s32.totalorder %s32, 1
      %p269 = por %p267, %p268
      %p271 = scmp.ne.s32.totalorder %s254, %s270
      %p272 = scmp.eq.s32.totalorder %s32, 0
      %p273 = por %p271, %p272
      %s275 = sadd.s32 %s274, 1
      %p278 = scmp.eq.s32.totalorder %s26, 1
      %p279 = scmp.ne.s32.totalorder %s274, %s276
      %p280 = scmp.eq.s32.totalorder %s26, 0
      %p281 = por %p279, %p280
      %p282 = scmp.ne.s32.totalorder %s274, %s276
      %p283 = scmp.eq.s32.totalorder %s31, 1
      %p284 = por %p282, %p283
      %p285 = scmp.ne.s32.totalorder %s276, %s277
      %p286 = scmp.eq.s32.totalorder %s31, 0
      %p287 = por %p285, %p286
      %p288 = scmp.ne.s32.totalorder %s276, %s277
      %p289 = scmp.eq.s32.totalorder %s32, 1
      %p290 = por %p288, %p289
      %p292 = scmp.ne.s32.totalorder %s277, %s291
      %p293 = scmp.eq.s32.totalorder %s32, 0
      %p294 = por %p292, %p293
      %s295 = ssub.s32 %s26, %s33
      %p296 = scmp.eq.s32.totalorder %s295, 0
      %s298 = sadd.s32 %s297, 1
      %s299 = scalar_select %p296, %s297, %s298
      %p302 = pneg %p296
      %p303 = scmp.eq.s32.totalorder %s26, 1
      %p304 = por %p302, %p303
      %p305 = scmp.ne.s32.totalorder %s297, %s300
      %p306 = scmp.eq.s32.totalorder %s26, 0
      %p307 = por %p305, %p306
      %p308 = scmp.ne.s32.totalorder %s297, %s300
      %p309 = scmp.eq.s32.totalorder %s31, 1
      %p310 = por %p308, %p309
      %p311 = scmp.ne.s32.totalorder %s300, %s301
      %p312 = scmp.eq.s32.totalorder %s31, 0
      %p313 = por %p311, %p312
      %p314 = scmp.ne.s32.totalorder %s300, %s301
      %p315 = scmp.eq.s32.totalorder %s32, 1
      %p316 = por %p314, %p315
      %p318 = scmp.ne.s32.totalorder %s301, %s317
      %p319 = scmp.eq.s32.totalorder %s32, 0
      %p320 = por %p318, %p319
      %s321 = ssub.s32 %s26, %s33
      %p322 = scmp.eq.s32.totalorder %s321, 0
      %s324 = sadd.s32 %s323, 1
      %s325 = scalar_select %p322, %s323, %s324
      %p328 = pneg %p322
      %p329 = scmp.eq.s32.totalorder %s26, 1
      %p330 = por %p328, %p329
      %p331 = scmp.ne.s32.totalorder %s323, %s326
      %p332 = scmp.eq.s32.totalorder %s26, 0
      %p333 = por %p331, %p332
      %p334 = scmp.ne.s32.totalorder %s323, %s326
      %p335 = scmp.eq.s32.totalorder %s31, 1
      %p336 = por %p334, %p335
      %p337 = scmp.ne.s32.totalorder %s326, %s327
      %p338 = scmp.eq.s32.totalorder %s31, 0
      %p339 = por %p337, %p338
      %p340 = scmp.ne.s32.totalorder %s326, %s327
      %p341 = scmp.eq.s32.totalorder %s32, 1
      %p342 = por %p340, %p341
      %p344 = scmp.ne.s32.totalorder %s327, %s343
      %p345 = scmp.eq.s32.totalorder %s32, 0
      %p346 = por %p344, %p345
      %s347 = ssub.s32 %s26, %s33
      %p348 = scmp.eq.s32.totalorder %s347, 0
      %s350 = sadd.s32 %s349, 1
      %s351 = scalar_select %p348, %s349, %s350
      %p354 = pneg %p348
      %p355 = scmp.eq.s32.totalorder %s26, 1
      %p356 = por %p354, %p355
      %p357 = scmp.ne.s32.totalorder %s349, %s352
      %p358 = scmp.eq.s32.totalorder %s26, 0
      %p359 = por %p357, %p358
      %p360 = scmp.ne.s32.totalorder %s349, %s352
      %p361 = scmp.eq.s32.totalorder %s31, 1
      %p362 = por %p360, %p361
      %p363 = scmp.ne.s32.totalorder %s352, %s353
      %p364 = scmp.eq.s32.totalorder %s31, 0
      %p365 = por %p363, %p364
      %p366 = scmp.ne.s32.totalorder %s352, %s353
      %p367 = scmp.eq.s32.totalorder %s32, 1
      %p368 = por %p366, %p367
      %p370 = scmp.ne.s32.totalorder %s353, %s369
      %p371 = scmp.eq.s32.totalorder %s32, 0
      %p372 = por %p370, %p371
      %p373 = scmp.le.s32.totalorder 1, %s26
      %p374 = scmp.lt.s32.totalorder %s26, 3
      %p375 = pnand %p373, %p374
      %p376 = pneg %p375
      // Predicated region
      $region9: #{tpu_custom_call.1} parent=5 // pred_check
        _
      $region10: #{tpu_custom_call.1} parent=5 // pred_check_branch
        %378 = sbr.rel (%p375) target = $region12
      $region11: #{tpu_custom_call.1} parent=5 // pred_region
        %s379 = ssub.s32 %s26, 1
        // Predicated region
        $region13: #{tpu_custom_call.1} parent=11 // pred_check
          %p380 = pneg %p125
        $region14: #{tpu_custom_call.1} parent=11 // pred_check_branch
          %382 = sbr.rel (%p380) target = $region16
        $region15: #{tpu_custom_call.1} parent=11 // pred_region
          _
        $region16: #{tpu_custom_call.1} parent=11 // pred_fallthru
          _
        // Predicated region
        $region17: #{tpu_custom_call.1} parent=11 // pred_check
          %p383 = pneg %p146
        $region18: #{tpu_custom_call.1} parent=11 // pred_check_branch
          %385 = sbr.rel (%p383) target = $region20
        $region19: #{tpu_custom_call.1} parent=11 // pred_region
          _
        $region20: #{tpu_custom_call.1} parent=11 // pred_fallthru
          _
        // Predicated region
        $region21: #{tpu_custom_call.1} parent=11 // pred_check
          %p386 = pneg %p219
        $region22: #{tpu_custom_call.1} parent=11 // pred_check_branch
          %388 = sbr.rel (%p386) target = $region24
        $region23: #{tpu_custom_call.1} parent=11 // pred_region
          _
        $region24: #{tpu_custom_call.1} parent=11 // pred_fallthru
          _
        // Predicated region
        $region25: #{tpu_custom_call.1} parent=11 // pred_check
          %p389 = pneg %p240
        $region26: #{tpu_custom_call.1} parent=11 // pred_check_branch
          %391 = sbr.rel (%p389) target = $region28
        $region27: #{tpu_custom_call.1} parent=11 // pred_region
          _
        $region28: #{tpu_custom_call.1} parent=11 // pred_fallthru
          _
        // Predicated region
        $region29: #{tpu_custom_call.1} parent=11 // pred_check
          %p392 = pneg %p287
        $region30: #{tpu_custom_call.1} parent=11 // pred_check_branch
          %394 = sbr.rel (%p392) target = $region32
        $region31: #{tpu_custom_call.1} parent=11 // pred_region
          _
        $region32: #{tpu_custom_call.1} parent=11 // pred_fallthru
          _
      $region12: #{tpu_custom_call.1} parent=5 // pred_fallthru
        _
      %p395 = scmp.lt.s32.totalorder %s26, 2
      // Predicated region
      $region33: #{tpu_custom_call.1} parent=5 // pred_check
        %p396 = pneg %p395
      $region34: #{tpu_custom_call.1} parent=5 // pred_check_branch
        %398 = sbr.rel (%p396) target = $region36
      $region35: #{tpu_custom_call.1} parent=5 // pred_region
        // Predicated region
        $region37: #{tpu_custom_call.1} parent=35 // pred_check
          %p399 = pneg %p46
        $region38: #{tpu_custom_call.1} parent=35 // pred_check_branch
          %401 = sbr.rel (%p399) target = $region40
        $region39: #{tpu_custom_call.1} parent=35 // pred_region
          %p402 = scmp.lt.s32.totalorder %s26, 1
          %s403 = scalar_select %p402, %s26, 1
          %s404 = smul.addr %s403, 2
          %s405 = smul.addr %s404, 2
          %s406 = scalar_lea.vmem %s0, %s405
        $region40: #{tpu_custom_call.1} parent=35 // pred_fallthru
          _
        // Predicated region
        $region41: #{tpu_custom_call.1} parent=35 // pred_check
          %p407 = pneg %p72
        $region42: #{tpu_custom_call.1} parent=35 // pred_check_branch
          %409 = sbr.rel (%p407) target = $region44
        $region43: #{tpu_custom_call.1} parent=35 // pred_region
          %p410 = scmp.lt.s32.totalorder %s26, 1
          %s411 = scalar_select %p410, %s26, 1
          %s412 = smul.addr %s411, 4
          %s413 = scalar_lea.vmem %s1, %s412
        $region44: #{tpu_custom_call.1} parent=35 // pred_fallthru
          _
        // Predicated region
        $region45: #{tpu_custom_call.1} parent=35 // pred_check
          %p414 = pneg %p98
        $region46: #{tpu_custom_call.1} parent=35 // pred_check_branch
          %416 = sbr.rel (%p414) target = $region48
        $region47: #{tpu_custom_call.1} parent=35 // pred_region
          %p417 = scmp.lt.s32.totalorder %s26, 1
          %s418 = scalar_select %p417, %s26, 1
          %s419 = smul.addr %s418, 8
          %s420 = scalar_lea.vmem %s2, %s419
        $region48: #{tpu_custom_call.1} parent=35 // pred_fallthru
          _
        // Predicated region
        $region49: #{tpu_custom_call.1} parent=35 // pred_check
          %p421 = pneg %p166
        $region50: #{tpu_custom_call.1} parent=35 // pred_check_branch
          %423 = sbr.rel (%p421) target = $region52
        $region51: #{tpu_custom_call.1} parent=35 // pred_region
          %p424 = scmp.lt.s32.totalorder %s26, 1
          %s425 = scalar_select %p424, %s26, 1
          %s426 = smul.addr %s425, 8
          %s427 = scalar_lea.vmem %s5, %s426
        $region52: #{tpu_custom_call.1} parent=35 // pred_fallthru
          _
        // Predicated region
        $region53: #{tpu_custom_call.1} parent=35 // pred_check
          %p428 = pneg %p192
        $region54: #{tpu_custom_call.1} parent=35 // pred_check_branch
          %430 = sbr.rel (%p428) target = $region56
        $region55: #{tpu_custom_call.1} parent=35 // pred_region
          %p431 = scmp.lt.s32.totalorder %s26, 1
          %s432 = scalar_select %p431, %s26, 1
          %s433 = smul.addr %s432, 8
          %s434 = scalar_lea.vmem %s6, %s433
        $region56: #{tpu_custom_call.1} parent=35 // pred_fallthru
          _
        // Predicated region
        $region57: #{tpu_custom_call.1} parent=35 // pred_check
          %p435 = pneg %p260
        $region58: #{tpu_custom_call.1} parent=35 // pred_check_branch
          %437 = sbr.rel (%p435) target = $region60
        $region59: #{tpu_custom_call.1} parent=35 // pred_region
          %p438 = scmp.lt.s32.totalorder %s26, 1
          %s439 = scalar_select %p438, %s26, 1
          %s440 = smul.addr %s439, 2
          %s441 = scalar_lea.vmem %s9, %s440
        $region60: #{tpu_custom_call.1} parent=35 // pred_fallthru
          _
        // Predicated region
        $region61: #{tpu_custom_call.1} parent=35 // pred_check
          %p442 = pneg %p307
        $region62: #{tpu_custom_call.1} parent=35 // pred_check_branch
          %444 = sbr.rel (%p442) target = $region64
        $region63: #{tpu_custom_call.1} parent=35 // pred_region
          %p445 = scmp.lt.s32.totalorder %s26, 1
          %s446 = scalar_select %p445, %s26, 1
          %s447 = smul.addr %s446, 2
          %s448 = smul.addr %s447, 4
          %s449 = scalar_lea.vmem %s11, %s448
        $region64: #{tpu_custom_call.1} parent=35 // pred_fallthru
          _
      $region36: #{tpu_custom_call.1} parent=5 // pred_fallthru
        _
      %p450 = scmp.le.s32.totalorder 1, %s26
      %p451 = scmp.lt.s32.totalorder %s26, 3
      %p452 = pnand %p450, %p451
      %p453 = pneg %p452
      // Predicated region
      $region65: #{tpu_custom_call.1} parent=5 // pred_check
        _
      $region66: #{tpu_custom_call.1} parent=5 // pred_check_branch
        %455 = sbr.rel (%p452) target = $region68
      $region67: #{tpu_custom_call.1} parent=5 // pred_region
        %s456 = ssub.s32 %s26, 1
        %p457 = scmp.lt.s32.totalorder %s31, 1
        %s458 = scalar_select %p457, %s31, 1
        %s459 = smul.addr %s458, 2
        %s460 = smul.addr %s459, 2
        %s461 = scalar_lea.vmem %s0, %s460
        %p462 = pneg %p52
        %p463 = pneg %p49
        %p464 = scmp.lt.s32.totalorder %s31, 1
        %s465 = scalar_select %p464, %s31, 1
        %s466 = smul.addr %s465, 4
        %s467 = scalar_lea.vmem %s1, %s466
        %p468 = pneg %p78
        %p469 = pneg %p75
        %p470 = scmp.lt.s32.totalorder %s31, 1
        %s471 = scalar_select %p470, %s31, 1
        %s472 = smul.addr %s471, 8
        %s473 = scalar_lea.vmem %s2, %s472
        %p474 = pneg %p104
        %p475 = pneg %p101
        %p476 = pneg %p125
        %p477 = pneg %p122
        %p478 = pneg %p146
        %p479 = pneg %p143
        %p480 = scmp.lt.s32.totalorder %s31, 1
        %s481 = scalar_select %p480, %s31, 1
        %s482 = smul.addr %s481, 8
        %s483 = scalar_lea.vmem %s5, %s482
        %p484 = pneg %p172
        %p485 = pneg %p169
        %p486 = scmp.lt.s32.totalorder %s31, 1
        %s487 = scalar_select %p486, %s31, 1
        %s488 = smul.addr %s487, 8
        %s489 = scalar_lea.vmem %s6, %s488
        %p490 = pneg %p198
        %p491 = pneg %p195
        %p492 = pneg %p219
        %p493 = pneg %p216
        %p494 = pneg %p240
        %p495 = pneg %p237
        %p496 = scmp.lt.s32.totalorder %s31, 1
        %s497 = scalar_select %p496, %s31, 1
        %s498 = smul.addr %s497, 2
        %s499 = scalar_lea.vmem %s9, %s498
        %p500 = pneg %p266
        %p501 = pneg %p263
        %p502 = pneg %p287
        %p503 = pneg %p284
        %p504 = scmp.lt.s32.totalorder %s31, 1
        %s505 = scalar_select %p504, %s31, 1
        %s506 = smul.addr %s505, 2
        %s507 = smul.addr %s506, 4
        %s508 = scalar_lea.vmem %s11, %s507
        %p509 = pneg %p313
        %p510 = pneg %p310
        %p511 = pneg %p339
        %p512 = pneg %p336
        %s513 = sand.u32 %s326, 1
        %s514 = scalar_lea.sflag [#allocation5], %s513
        %s515 = sand.u32 %s326, 1
        %s516 = smul.addr %s515, 16
        %s517 = scalar_lea.vmem [#allocation4], %s516
        %p518 = pneg %p365
        %p519 = pneg %p362
        %s520 = sand.u32 %s352, 1
        %s521 = scalar_lea.sflag [#allocation7], %s520
        %s522 = sand.u32 %s352, 1
        %s523 = smul.addr %s522, 8
        %s524 = scalar_lea.vmem [#allocation6], %s523
        %p525 = scmp.lt.s32.totalorder %s31, 1
        %s526 = scalar_select %p525, %s31, 1
        %s527 = smul.addr %s526, 2
        %s528 = smul.addr %s527, 2
        %s529 = scalar_lea.vmem %s0, %s528
        %p530 = scmp.lt.s32.totalorder %s31, 1
        %s531 = scalar_select %p530, %s31, 1
        %s532 = smul.addr %s531, 4
        %s533 = scalar_lea.vmem %s1, %s532
        %p534 = scmp.lt.s32.totalorder %s31, 1
        %s535 = scalar_select %p534, %s31, 1
        %s536 = smul.addr %s535, 8
        %s537 = scalar_lea.vmem %s2, %s536
        %p538 = scmp.lt.s32.totalorder %s31, 1
        %s539 = scalar_select %p538, %s31, 1
        %s540 = smul.addr %s539, 8
        %s541 = scalar_lea.vmem %s5, %s540
        %p542 = scmp.lt.s32.totalorder %s31, 1
        %s543 = scalar_select %p542, %s31, 1
        %s544 = smul.addr %s543, 8
        %s545 = scalar_lea.vmem %s6, %s544
        %p546 = scmp.lt.s32.totalorder %s31, 1
        %s547 = scalar_select %p546, %s31, 1
        %s548 = smul.addr %s547, 2
        %s549 = scalar_lea.vmem %s9, %s548
        %p550 = scmp.lt.s32.totalorder %s31, 1
        %s551 = scalar_select %p550, %s31, 1
        %s552 = smul.addr %s551, 2
        %s553 = smul.addr %s552, 4
        %s554 = scalar_lea.vmem %s11, %s553
        %v556 = vlaneseq
        %v557 = vand.u32 %v556, 127
        %v558 = vadd.s32 %v557, 128
        %vm559 = vcmp.lt.s32.totalorder %v557, 0
        %v560 = vsub.s32 0, %v557
        %v561 = vsel %vm559, %v560, %v557
        %v562 = vshrl.u32 %v561, 4
        %v563 = vand.u32 %v561, 15
        %v564 = vsub.s32 0, %v563
        %v565 = vsel %vm559, %v564, %v563
        %vm566 = vcmp.lt.s32.totalorder %v558, 0
        %v567 = vsub.s32 0, %v558
        %v568 = vsel %vm566, %v567, %v558
        %v569 = vshrl.u32 %v568, 4
        %v570 = vand.u32 %v568, 15
        %v571 = vsub.s32 0, %v570
        %v572 = vsel %vm566, %v571, %v570
        %vm573 = vcmp.ne.s32.totalorder %v565, 0
        %vm574 = vcmp.ne.s32.totalorder %v572, 0
        %vm575 = vcmp.lt.s32.totalorder %v565, 0
        %vm576 = vcmp.lt.s32.totalorder %v572, 0
        %vm577 = vmand %vm575, %vm573
        %vm578 = vmand %vm576, %vm574
        %v579 = vadd.s32 %v565, 16
        %v580 = vadd.s32 %v572, 16
        %v581 = vsel %vm577, %v579, %v565
        %v582 = vsel %vm578, %v580, %v572
        %v583 = vadd.s32 %v581, 4294967295
        %v584 = vadd.s32 %v582, 4294967295
        %vm585 = vcmp.ge.s32.totalorder %v583, 0
        %vm586 = vcmp.ge.s32.totalorder %v584, 0
        %vm587 = vcmp.lt.s32.totalorder %v583, 16
        %vm588 = vcmp.lt.s32.totalorder %v584, 16
        %vm589 = vmand %vm585, %vm587
        %vm590 = vmand %vm586, %vm588
        %v591 = vsel %vm589, 1, 0
        %v592 = vsel %vm590, 1, 0
        %v593 = vcvt.s32.f32 %v591
        %v594 = vcvt.s32.f32 %v592
        %v595 = vpack.c.bf16 %v593, %v593
        %v596 = vpack.c.bf16 %v594, %v594
        %v597 = vadd.s32 %v581, 1
        %v598 = vadd.s32 %v582, 1
        %vm599 = vcmp.ge.s32.totalorder %v597, 0
        %vm600 = vcmp.ge.s32.totalorder %v598, 0
        %vm601 = vcmp.lt.s32.totalorder %v597, 16
        %vm602 = vcmp.lt.s32.totalorder %v598, 16
        %vm603 = vmand %vm599, %vm601
        %vm604 = vmand %vm600, %vm602
        %v605 = vsel %vm603, 1, 0
        %v606 = vsel %vm604, 1, 0
        %v607 = vcvt.s32.f32 %v605
        %v608 = vcvt.s32.f32 %v606
        %v609 = vpack.c.bf16 %v607, %v607
        %v610 = vpack.c.bf16 %v608, %v608
        %v611 = vld [vmem:[%s529] sm:$0xf]
        %v612 = vunpack.c.l.bf16 %v611
        %v613 = vld [vmem:[%s533] sm:$0xf]
        %615 = vset.pattern.permute.xlu0 0
        %616 = vperm.xlu0 %615, %v613
        %v617 = vpop.permute.xlu0 %616
        %v619 = vunpack.c.l.s4 839922192
        %v620 = vunpack.c.0.s8 %v619
        %v621 = vlaneseq
        %v622 = vshrl.u32 %v621, 7
        %v623 = vsub.s32 %v620, %v622
        %v624 = vrot.slane %v617, %v623
        %v626 = vmul.f32 %v612, %v624
        %v628 = vcombine.high %v626, %v626
        %v630 = vpack.c.bf16 %v626, %v626
        %v631 = vpack.c.bf16 %v628, %v628
        %632 = vst [vmem:[#allocation2] sm:$0x3] 0
        %633 = vst [vmem:[#allocation2 + $0x6] sm:$0x3] 0
        %v636 = vcombine.low %v630, %v631
        %v638 = vunpack.c.l.s4 1983009808
        %v639 = vunpack.c.0.s8 %v638
        %v640 = vlaneseq
        %v641 = vshrl.u32 %v640, 7
        %v642 = vsub.s32 %v639, %v641
        %v643 = vrot.slane %v636, %v642
        %645 = vst [vmem:[#allocation2 + $0x2] sm:$0xf] %v643
        %v646 = vld [vmem:[#allocation2] sm:$0x3f]
        %v649 = vcombine.low %v595, %v596
        %v651 = vunpack.c.l.s4 1983009808
        %v652 = vunpack.c.0.s8 %v651
        %v653 = vlaneseq
        %v654 = vshrl.u32 %v653, 7
        %v655 = vsub.s32 %v652, %v654
        %v656 = vrot.slane %v649, %v655
        %657 = vrot.lane.b32.xlu0 %v656, 111
        %v658 = vpop.permute.xlu0 %657
        %v659 = vrot.slane %v658, 6
        %vm660 = vcmask 908288
        %v661 = vsel %vm660, %v659, %v658
        %v663 = vmul.bf16 %v646, %v661
        %v664 = vld [vmem:[%s3] sm:$0xf]
        %s665 = scalar_lea.vmem %s3, 4
        %v666 = vld [vmem:[%s665] sm:$0xf]
        %v668 = vcombine.high %v646, %v646
        %v670 = vunpack.c.l.s4 1983009808
        %v671 = vunpack.c.0.s8 %v670
        %v672 = vlaneseq
        %v673 = vshrl.u32 %v672, 7
        %v674 = vsub.s32 %v671, %v673
        %v675 = vrot.slane %v646, %v674
        %v677 = vunpack.c.l.s4 1983009808
        %v678 = vunpack.c.0.s8 %v677
        %v679 = vlaneseq
        %v680 = vshrl.u32 %v679, 7
        %v681 = vsub.s32 %v678, %v680
        %v682 = vrot.slane %v668, %v681
        %v683 = vcombine.high %v675, %v675
        %684 = vrot.lane.b32.xlu0 %v675, 16
        %v685 = vpop.permute.xlu0 %684
        %686 = vrot.lane.b32.xlu0 %v683, 16
        %v687 = vpop.permute.xlu0 %686
        %688 = vrot.lane.b32.xlu0 %v682, 16
        %v689 = vpop.permute.xlu0 %688
        %vm690 = vcmask 130048
        %v691 = vsel %vm690, %v685, %v687
        %v692 = vsel %vm690, %v687, %v689
        %vm693 = vcmask 31744
        %v695 = vsel %vm693, %v666, 0
        %vm697 = vcmask 1041408
        %v699 = vsel %vm697, %v691, 0
        %v702 = vsel %vm697, %v692, 0
        %704 = vmatprep.subr.bf16.mxu0 %v702
        %705 = vmatpush1.bf16.msra.mxu0 %v699
        %706 = vmatprep.subr.bf16.mxu0 0
        %707 = vmatpush1.bf16.msra.mxu0 0
        %708 = vmatprep.subr.bf16.mxu0 0
        %709 = vmatpush1.bf16.msra.mxu0 0
        %710 = vmatprep.subr.bf16.mxu0 0
        %711 = vmatpush1.bf16.msra.mxu0 0
        %712 = vmatprep.subr.bf16.mxu0 0
        %713 = vmatpush1.bf16.msra.mxu0 0
        %714 = vmatprep.subr.bf16.mxu0 0
        %715 = vmatpush1.bf16.msra.mxu0 0
        %716 = vmatprep.subr.bf16.mxu0 0
        %717 = vmatpush1.bf16.msra.mxu0 0
        %718 = vmatprep.subr.bf16.mxu0 0
        %719 = vmatpush1.bf16.msra.mxu0 0
        %720 = vmatprep.subr.bf16.mxu0 0
        %721 = vmatpush1.bf16.msra.mxu0 0
        %722 = vmatprep.subr.bf16.mxu0 0
        %723 = vmatpush1.bf16.msra.mxu0 0
        %724 = vmatprep.subr.bf16.mxu0 0
        %725 = vmatpush1.bf16.msra.mxu0 0
        %726 = vmatprep.subr.bf16.mxu0 0
        %727 = vmatpush1.bf16.msra.mxu0 0
        %728 = vmatprep.subr.bf16.mxu0 0
        %729 = vmatpush1.bf16.msra.mxu0 0
        %730 = vmatprep.subr.bf16.mxu0 0
        %731 = vmatpush1.bf16.msra.mxu0 0
        %732 = vmatprep.subr.bf16.mxu0 0
        %733 = vmatpush1.bf16.msra.mxu0 0
        %734 = vmatprep.subr.bf16.mxu0 0
        %735 = vmatpush1.bf16.msra.mxu0 0
        %736 = vmatprep.mubr.bf16.mxu0 0
        %737 = vmatmul.mubr.bf16.gmra.mrb[0].mxu0 %v695
        %v738 = vpop.f32.mrb[0].mxu0
        %v739 = vadd.f32 0.0, %v738
        %v740 = vpop.f32.mrb[0].mxu0
        %v741 = vadd.f32 0.0, %v740
        %v742 = vpop.f32.mrb[0].mxu0
        %v743 = vpop.f32.mrb[0].mxu0
        %744 = vdwg.mxu0
        %v746 = vcombine.high %v663, %v663
        %v748 = vunpack.c.l.s4 1983009808
        %v749 = vunpack.c.0.s8 %v748
        %v750 = vlaneseq
        %v751 = vshrl.u32 %v750, 7
        %v752 = vsub.s32 %v749, %v751
        %v753 = vrot.slane %v663, %v752
        %v755 = vunpack.c.l.s4 1983009808
        %v756 = vunpack.c.0.s8 %v755
        %v757 = vlaneseq
        %v758 = vshrl.u32 %v757, 7
        %v759 = vsub.s32 %v756, %v758
        %v760 = vrot.slane %v746, %v759
        %v761 = vcombine.high %v753, %v753
        %762 = vrot.lane.b32.xlu0 %v753, 17
        %v763 = vpop.permute.xlu0 %762
        %764 = vrot.lane.b32.xlu0 %v761, 17
        %v765 = vpop.permute.xlu0 %764
        %766 = vrot.lane.b32.xlu0 %v760, 17
        %v767 = vpop.permute.xlu0 %766
        %vm768 = vcmask 138240
        %v769 = vsel %vm768, %v763, %v765
        %v770 = vsel %vm768, %v765, %v767
        %v772 = vsel %vm693, %v664, 0
        %v775 = vsel %vm697, %v769, 0
        %v778 = vsel %vm697, %v770, 0
        %780 = vmatprep.subr.bf16.mxu0 %v778
        %781 = vmatpush1.bf16.msra.mxu0 %v775
        %782 = vmatprep.subr.bf16.mxu0 0
        %783 = vmatpush1.bf16.msra.mxu0 0
        %784 = vmatprep.subr.bf16.mxu0 0
        %785 = vmatpush1.bf16.msra.mxu0 0
        %786 = vmatprep.subr.bf16.mxu0 0
        %787 = vmatpush1.bf16.msra.mxu0 0
        %788 = vmatprep.subr.bf16.mxu0 0
        %789 = vmatpush1.bf16.msra.mxu0 0
        %790 = vmatprep.subr.bf16.mxu0 0
        %791 = vmatpush1.bf16.msra.mxu0 0
        %792 = vmatprep.subr.bf16.mxu0 0
        %793 = vmatpush1.bf16.msra.mxu0 0
        %794 = vmatprep.subr.bf16.mxu0 0
        %795 = vmatpush1.bf16.msra.mxu0 0
        %796 = vmatprep.subr.bf16.mxu0 0
        %797 = vmatpush1.bf16.msra.mxu0 0
        %798 = vmatprep.subr.bf16.mxu0 0
        %799 = vmatpush1.bf16.msra.mxu0 0
        %800 = vmatprep.subr.bf16.mxu0 0
        %801 = vmatpush1.bf16.msra.mxu0 0
        %802 = vmatprep.subr.bf16.mxu0 0
        %803 = vmatpush1.bf16.msra.mxu0 0
        %804 = vmatprep.subr.bf16.mxu0 0
        %805 = vmatpush1.bf16.msra.mxu0 0
        %806 = vmatprep.subr.bf16.mxu0 0
        %807 = vmatpush1.bf16.msra.mxu0 0
        %808 = vmatprep.subr.bf16.mxu0 0
        %809 = vmatpush1.bf16.msra.mxu0 0
        %810 = vmatprep.subr.bf16.mxu0 0
        %811 = vmatpush1.bf16.msra.mxu0 0
        %812 = vmatprep.mubr.bf16.mxu0 0
        %813 = vmatmul.mubr.bf16.gmra.mrb[0].mxu0 %v772
        %v814 = vpop.f32.mrb[0].mxu0
        %v815 = vadd.f32 %v739, %v814
        %v816 = vpop.f32.mrb[0].mxu0
        %v817 = vadd.f32 %v741, %v816
        %v818 = vpop.f32.mrb[0].mxu0
        %v819 = vpop.f32.mrb[0].mxu0
        %820 = vdwg.mxu0
        %v821 = vld [vmem:[#allocation2] sm:$0x3f]
        %v824 = vcombine.low %v609, %v610
        %v826 = vunpack.c.l.s4 1983009808
        %v827 = vunpack.c.0.s8 %v826
        %v828 = vlaneseq
        %v829 = vshrl.u32 %v828, 7
        %v830 = vsub.s32 %v827, %v829
        %v831 = vrot.slane %v824, %v830
        %832 = vrot.lane.b32.xlu0 %v831, 113
        %v833 = vpop.permute.xlu0 %832
        %v834 = vrot.slane %v833, 6
        %vm835 = vcmask 924672
        %v836 = vsel %vm835, %v834, %v833
        %v838 = vmul.bf16 %v821, %v836
        %s839 = scalar_lea.vmem %s3, 8
        %v840 = vld [vmem:[%s839] sm:$0xf]
        %v842 = vcombine.high %v838, %v838
        %v844 = vunpack.c.l.s4 1983009808
        %v845 = vunpack.c.0.s8 %v844
        %v846 = vlaneseq
        %v847 = vshrl.u32 %v846, 7
        %v848 = vsub.s32 %v845, %v847
        %v849 = vrot.slane %v838, %v848
        %v851 = vunpack.c.l.s4 1983009808
        %v852 = vunpack.c.0.s8 %v851
        %v853 = vlaneseq
        %v854 = vshrl.u32 %v853, 7
        %v855 = vsub.s32 %v852, %v854
        %v856 = vrot.slane %v842, %v855
        %v857 = vcombine.high %v849, %v849
        %858 = vrot.lane.b32.xlu0 %v849, 15
        %v859 = vpop.permute.xlu0 %858
        %860 = vrot.lane.b32.xlu0 %v857, 15
        %v861 = vpop.permute.xlu0 %860
        %862 = vrot.lane.b32.xlu0 %v856, 15
        %v863 = vpop.permute.xlu0 %862
        %vm864 = vcmask 121856
        %v865 = vsel %vm864, %v859, %v861
        %v866 = vsel %vm864, %v861, %v863
        %v868 = vsel %vm693, %v840, 0
        %v871 = vsel %vm697, %v865, 0
        %v874 = vsel %vm697, %v866, 0
        %876 = vmatprep.subr.bf16.mxu0 %v874
        %877 = vmatpush1.bf16.msra.mxu0 %v871
        %878 = vmatprep.subr.bf16.mxu0 0
        %879 = vmatpush1.bf16.msra.mxu0 0
        %880 = vmatprep.subr.bf16.mxu0 0
        %881 = vmatpush1.bf16.msra.mxu0 0
        %882 = vmatprep.subr.bf16.mxu0 0
        %883 = vmatpush1.bf16.msra.mxu0 0
        %884 = vmatprep.subr.bf16.mxu0 0
        %885 = vmatpush1.bf16.msra.mxu0 0
        %886 = vmatprep.subr.bf16.mxu0 0
        %887 = vmatpush1.bf16.msra.mxu0 0
        %888 = vmatprep.subr.bf16.mxu0 0
        %889 = vmatpush1.bf16.msra.mxu0 0
        %890 = vmatprep.subr.bf16.mxu0 0
        %891 = vmatpush1.bf16.msra.mxu0 0
        %892 = vmatprep.subr.bf16.mxu0 0
        %893 = vmatpush1.bf16.msra.mxu0 0
        %894 = vmatprep.subr.bf16.mxu0 0
        %895 = vmatpush1.bf16.msra.mxu0 0
        %896 = vmatprep.subr.bf16.mxu0 0
        %897 = vmatpush1.bf16.msra.mxu0 0
        %898 = vmatprep.subr.bf16.mxu0 0
        %899 = vmatpush1.bf16.msra.mxu0 0
        %900 = vmatprep.subr.bf16.mxu0 0
        %901 = vmatpush1.bf16.msra.mxu0 0
        %902 = vmatprep.subr.bf16.mxu0 0
        %903 = vmatpush1.bf16.msra.mxu0 0
        %904 = vmatprep.subr.bf16.mxu0 0
        %905 = vmatpush1.bf16.msra.mxu0 0
        %906 = vmatprep.subr.bf16.mxu0 0
        %907 = vmatpush1.bf16.msra.mxu0 0
        %908 = vmatprep.mubr.bf16.mxu0 0
        %909 = vmatmul.mubr.bf16.gmra.mrb[0].mxu0 %v868
        %v910 = vpop.f32.mrb[0].mxu0
        %v911 = vadd.f32 0.0, %v910
        %v912 = vpop.f32.mrb[0].mxu0
        %v913 = vadd.f32 0.0, %v912
        %v914 = vpop.f32.mrb[0].mxu0
        %v915 = vpop.f32.mrb[0].mxu0
        %916 = vdwg.mxu0
        %v917 = vadd.f32 %v815, %v911
        %v918 = vadd.f32 %v817, %v913
        %v919 = vld [vmem:[#allocation2] sm:$0x3f]
        %920 = vrot.lane.b32.xlu0 %v656, 127
        %v921 = vpop.permute.xlu0 %920
        %v922 = vrot.slane %v921, 6
        %vm923 = vcmask 1039360
        %v924 = vsel %vm923, %v922, %v921
        %v926 = vmul.bf16 %v919, %v924
        %s927 = scalar_lea.vmem %s3, 12
        %v928 = vld [vmem:[%s927] sm:$0xf]
        %v930 = vcombine.high %v926, %v926
        %v932 = vunpack.c.l.s4 1983009808
        %v933 = vunpack.c.0.s8 %v932
        %v934 = vlaneseq
        %v935 = vshrl.u32 %v934, 7
        %v936 = vsub.s32 %v933, %v935
        %v937 = vrot.slane %v926, %v936
        %v939 = vunpack.c.l.s4 1983009808
        %v940 = vunpack.c.0.s8 %v939
        %v941 = vlaneseq
        %v942 = vshrl.u32 %v941, 7
        %v943 = vsub.s32 %v940, %v942
        %v944 = vrot.slane %v930, %v943
        %v945 = vcombine.high %v937, %v937
        %946 = vrot.lane.b32.xlu0 %v937, 1
        %v947 = vpop.permute.xlu0 %946
        %948 = vrot.lane.b32.xlu0 %v945, 1
        %v949 = vpop.permute.xlu0 %948
        %950 = vrot.lane.b32.xlu0 %v944, 1
        %v951 = vpop.permute.xlu0 %950
        %vm952 = vcmask 7168
        %v953 = vsel %vm952, %v947, %v949
        %v954 = vsel %vm952, %v949, %v951
        %v956 = vsel %vm693, %v928, 0
        %v959 = vsel %vm697, %v953, 0
        %v962 = vsel %vm697, %v954, 0
        %964 = vmatprep.subr.bf16.mxu0 %v962
        %965 = vmatpush1.bf16.msra.mxu0 %v959
        %966 = vmatprep.subr.bf16.mxu0 0
        %967 = vmatpush1.bf16.msra.mxu0 0
        %968 = vmatprep.subr.bf16.mxu0 0
        %969 = vmatpush1.bf16.msra.mxu0 0
        %970 = vmatprep.subr.bf16.mxu0 0
        %971 = vmatpush1.bf16.msra.mxu0 0
        %972 = vmatprep.subr.bf16.mxu0 0
        %973 = vmatpush1.bf16.msra.mxu0 0
        %974 = vmatprep.subr.bf16.mxu0 0
        %975 = vmatpush1.bf16.msra.mxu0 0
        %976 = vmatprep.subr.bf16.mxu0 0
        %977 = vmatpush1.bf16.msra.mxu0 0
        %978 = vmatprep.subr.bf16.mxu0 0
        %979 = vmatpush1.bf16.msra.mxu0 0
        %980 = vmatprep.subr.bf16.mxu0 0
        %981 = vmatpush1.bf16.msra.mxu0 0
        %982 = vmatprep.subr.bf16.mxu0 0
        %983 = vmatpush1.bf16.msra.mxu0 0
        %984 = vmatprep.subr.bf16.mxu0 0
        %985 = vmatpush1.bf16.msra.mxu0 0
        %986 = vmatprep.subr.bf16.mxu0 0
        %987 = vmatpush1.bf16.msra.mxu0 0
        %988 = vmatprep.subr.bf16.mxu0 0
        %989 = vmatpush1.bf16.msra.mxu0 0
        %990 = vmatprep.subr.bf16.mxu0 0
        %991 = vmatpush1.bf16.msra.mxu0 0
        %992 = vmatprep.subr.bf16.mxu0 0
        %993 = vmatpush1.bf16.msra.mxu0 0
        %994 = vmatprep.subr.bf16.mxu0 0
        %995 = vmatpush1.bf16.msra.mxu0 0
        %996 = vmatprep.mubr.bf16.mxu0 0
        %997 = vmatmul.mubr.bf16.gmra.mrb[0].mxu0 %v956
        %v998 = vpop.f32.mrb[0].mxu0
        %v999 = vadd.f32 0.0, %v998
        %v1000 = vpop.f32.mrb[0].mxu0
        %v1001 = vadd.f32 0.0, %v1000
        %v1002 = vpop.f32.mrb[0].mxu0
        %v1003 = vpop.f32.mrb[0].mxu0
        %1004 = vdwg.mxu0
        %v1005 = vadd.f32 %v917, %v999
        %v1006 = vadd.f32 %v918, %v1001
        %v1007 = vld [vmem:[#allocation2 + $0x2] sm:$0xf]
        %s1008 = scalar_lea.vmem %s3, 16
        %v1009 = vld [vmem:[%s1008] sm:$0xf]
        %v1012 = vunpack.c.l.s4 1983009808
        %v1013 = vunpack.c.0.s8 %v1012
        %v1014 = vlaneseq
        %v1015 = vshrl.u32 %v1014, 7
        %v1016 = vsub.s32 %v1013, %v1015
        %v1017 = vrot.slane %v1007, %v1016
        %v1018 = vcombine.high %v1017, %v1017
        %v1020 = vsel %vm693, %v1009, 0
        %v1023 = vsel %vm697, %v1017, 0
        %v1026 = vsel %vm697, %v1018, 0
        %1028 = vmatprep.subr.bf16.mxu0 %v1026
        %1029 = vmatpush1.bf16.msra.mxu0 %v1023
        %1030 = vmatprep.subr.bf16.mxu0 0
        %1031 = vmatpush1.bf16.msra.mxu0 0
        %1032 = vmatprep.subr.bf16.mxu0 0
        %1033 = vmatpush1.bf16.msra.mxu0 0
        %1034 = vmatprep.subr.bf16.mxu0 0
        %1035 = vmatpush1.bf16.msra.mxu0 0
        %1036 = vmatprep.subr.bf16.mxu0 0
        %1037 = vmatpush1.bf16.msra.mxu0 0
        %1038 = vmatprep.subr.bf16.mxu0 0
        %1039 = vmatpush1.bf16.msra.mxu0 0
        %1040 = vmatprep.subr.bf16.mxu0 0
        %1041 = vmatpush1.bf16.msra.mxu0 0
        %1042 = vmatprep.subr.bf16.mxu0 0
        %1043 = vmatpush1.bf16.msra.mxu0 0
        %1044 = vmatprep.subr.bf16.mxu0 0
        %1045 = vmatpush1.bf16.msra.mxu0 0
        %1046 = vmatprep.subr.bf16.mxu0 0
        %1047 = vmatpush1.bf16.msra.mxu0 0
        %1048 = vmatprep.subr.bf16.mxu0 0
        %1049 = vmatpush1.bf16.msra.mxu0 0
        %1050 = vmatprep.subr.bf16.mxu0 0
        %1051 = vmatpush1.bf16.msra.mxu0 0
        %1052 = vmatprep.subr.bf16.mxu0 0
        %1053 = vmatpush1.bf16.msra.mxu0 0
        %1054 = vmatprep.subr.bf16.mxu0 0
        %1055 = vmatpush1.bf16.msra.mxu0 0
        %1056 = vmatprep.subr.bf16.mxu0 0
        %1057 = vmatpush1.bf16.msra.mxu0 0
        %1058 = vmatprep.subr.bf16.mxu0 0
        %1059 = vmatpush1.bf16.msra.mxu0 0
        %1060 = vmatprep.mubr.bf16.mxu0 0
        %1061 = vmatmul.mubr.bf16.gmra.mrb[0].mxu0 %v1020
        %v1062 = vpop.f32.mrb[0].mxu0
        %v1063 = vadd.f32 0.0, %v1062
        %v1064 = vpop.f32.mrb[0].mxu0
        %v1065 = vadd.f32 0.0, %v1064
        %v1066 = vpop.f32.mrb[0].mxu0
        %v1067 = vpop.f32.mrb[0].mxu0
        %1068 = vdwg.mxu0
        %v1069 = vadd.f32 %v1005, %v1063
        %v1070 = vadd.f32 %v1006, %v1065
        %v1071 = vld [vmem:[#allocation2 + $0x2] sm:$0x3f]
        %1072 = vrot.lane.b32.xlu0 %v831, 1
        %v1073 = vpop.permute.xlu0 %1072
        %v1074 = vrot.slane %v1073, 6
        %v1075 = vsel %vm952, %v1074, %v1073
        %v1077 = vmul.bf16 %v1071, %v1075
        %s1078 = scalar_lea.vmem %s3, 20
        %v1079 = vld [vmem:[%s1078] sm:$0xf]
        %v1081 = vcombine.high %v1077, %v1077
        %v1083 = vunpack.c.l.s4 1983009808
        %v1084 = vunpack.c.0.s8 %v1083
        %v1085 = vlaneseq
        %v1086 = vshrl.u32 %v1085, 7
        %v1087 = vsub.s32 %v1084, %v1086
        %v1088 = vrot.slane %v1077, %v1087
        %v1090 = vunpack.c.l.s4 1983009808
        %v1091 = vunpack.c.0.s8 %v1090
        %v1092 = vlaneseq
        %v1093 = vshrl.u32 %v1092, 7
        %v1094 = vsub.s32 %v1091, %v1093
        %v1095 = vrot.slane %v1081, %v1094
        %v1096 = vcombine.high %v1088, %v1088
        %1097 = vrot.lane.b32.xlu0 %v1088, 127
        %v1098 = vpop.permute.xlu0 %1097
        %1099 = vrot.lane.b32.xlu0 %v1096, 127
        %v1100 = vpop.permute.xlu0 %1099
        %1101 = vrot.lane.b32.xlu0 %v1095, 127
        %v1102 = vpop.permute.xlu0 %1101
        %v1103 = vsel %vm923, %v1098, %v1100
        %v1104 = vsel %vm923, %v1100, %v1102
        %v1106 = vsel %vm693, %v1079, 0
        %v1109 = vsel %vm697, %v1103, 0
        %v1112 = vsel %vm697, %v1104, 0
        %1114 = vmatprep.subr.bf16.mxu0 %v1112
        %1115 = vmatpush1.bf16.msra.mxu0 %v1109
        %1116 = vmatprep.subr.bf16.mxu0 0
        %1117 = vmatpush1.bf16.msra.mxu0 0
        %1118 = vmatprep.subr.bf16.mxu0 0
        %1119 = vmatpush1.bf16.msra.mxu0 0
        %1120 = vmatprep.subr.bf16.mxu0 0
        %1121 = vmatpush1.bf16.msra.mxu0 0
        %1122 = vmatprep.subr.bf16.mxu0 0
        %1123 = vmatpush1.bf16.msra.mxu0 0
        %1124 = vmatprep.subr.bf16.mxu0 0
        %1125 = vmatpush1.bf16.msra.mxu0 0
        %1126 = vmatprep.subr.bf16.mxu0 0
        %1127 = vmatpush1.bf16.msra.mxu0 0
        %1128 = vmatprep.subr.bf16.mxu0 0
        %1129 = vmatpush1.bf16.msra.mxu0 0
        %1130 = vmatprep.subr.bf16.mxu0 0
        %1131 = vmatpush1.bf16.msra.mxu0 0
        %1132 = vmatprep.subr.bf16.mxu0 0
        %1133 = vmatpush1.bf16.msra.mxu0 0
        %1134 = vmatprep.subr.bf16.mxu0 0
        %1135 = vmatpush1.bf16.msra.mxu0 0
        %1136 = vmatprep.subr.bf16.mxu0 0
        %1137 = vmatpush1.bf16.msra.mxu0 0
        %1138 = vmatprep.subr.bf16.mxu0 0
        %1139 = vmatpush1.bf16.msra.mxu0 0
        %1140 = vmatprep.subr.bf16.mxu0 0
        %1141 = vmatpush1.bf16.msra.mxu0 0
        %1142 = vmatprep.subr.bf16.mxu0 0
        %1143 = vmatpush1.bf16.msra.mxu0 0
        %1144 = vmatprep.subr.bf16.mxu0 0
        %1145 = vmatpush1.bf16.msra.mxu0 0
        %1146 = vmatprep.mubr.bf16.mxu0 0
        %1147 = vmatmul.mubr.bf16.gmra.mrb[0].mxu0 %v1106
        %v1148 = vpop.f32.mrb[0].mxu0
        %v1149 = vadd.f32 0.0, %v1148
        %v1150 = vpop.f32.mrb[0].mxu0
        %v1151 = vadd.f32 0.0, %v1150
        %v1152 = vpop.f32.mrb[0].mxu0
        %v1153 = vpop.f32.mrb[0].mxu0
        %1154 = vdwg.mxu0
        %v1155 = vadd.f32 %v1069, %v1149
        %v1156 = vadd.f32 %v1070, %v1151
        %v1157 = vld [vmem:[#allocation2 + $0x2] sm:$0x3f]
        %1158 = vrot.lane.b32.xlu0 %v656, 15
        %v1159 = vpop.permute.xlu0 %1158
        %v1160 = vrot.slane %v1159, 6
        %v1161 = vsel %vm864, %v1160, %v1159
        %v1163 = vmul.bf16 %v1157, %v1161
        %s1164 = scalar_lea.vmem %s3, 24
        %v1165 = vld [vmem:[%s1164] sm:$0xf]
        %v1167 = vcombine.high %v1163, %v1163
        %v1169 = vunpack.c.l.s4 1983009808
        %v1170 = vunpack.c.0.s8 %v1169
        %v1171 = vlaneseq
        %v1172 = vshrl.u32 %v1171, 7
        %v1173 = vsub.s32 %v1170, %v1172
        %v1174 = vrot.slane %v1163, %v1173
        %v1176 = vunpack.c.l.s4 1983009808
        %v1177 = vunpack.c.0.s8 %v1176
        %v1178 = vlaneseq
        %v1179 = vshrl.u32 %v1178, 7
        %v1180 = vsub.s32 %v1177, %v1179
        %v1181 = vrot.slane %v1167, %v1180
        %v1182 = vcombine.high %v1174, %v1174
        %1183 = vrot.lane.b32.xlu0 %v1174, 113
        %v1184 = vpop.permute.xlu0 %1183
        %1185 = vrot.lane.b32.xlu0 %v1182, 113
        %v1186 = vpop.permute.xlu0 %1185
        %1187 = vrot.lane.b32.xlu0 %v1181, 113
        %v1188 = vpop.permute.xlu0 %1187
        %v1189 = vsel %vm835, %v1184, %v1186
        %v1190 = vsel %vm835, %v1186, %v1188
        %v1192 = vsel %vm693, %v1165, 0
        %v1195 = vsel %vm697, %v1189, 0
        %v1198 = vsel %vm697, %v1190, 0
        %1200 = vmatprep.subr.bf16.mxu0 %v1198
        %1201 = vmatpush1.bf16.msra.mxu0 %v1195
        %1202 = vmatprep.subr.bf16.mxu0 0
        %1203 = vmatpush1.bf16.msra.mxu0 0
        %1204 = vmatprep.subr.bf16.mxu0 0
        %1205 = vmatpush1.bf16.msra.mxu0 0
        %1206 = vmatprep.subr.bf16.mxu0 0
        %1207 = vmatpush1.bf16.msra.mxu0 0
        %1208 = vmatprep.subr.bf16.mxu0 0
        %1209 = vmatpush1.bf16.msra.mxu0 0
        %1210 = vmatprep.subr.bf16.mxu0 0
        %1211 = vmatpush1.bf16.msra.mxu0 0
        %1212 = vmatprep.subr.bf16.mxu0 0
        %1213 = vmatpush1.bf16.msra.mxu0 0
        %1214 = vmatprep.subr.bf16.mxu0 0
        %1215 = vmatpush1.bf16.msra.mxu0 0
        %1216 = vmatprep.subr.bf16.mxu0 0
        %1217 = vmatpush1.bf16.msra.mxu0 0
        %1218 = vmatprep.subr.bf16.mxu0 0
        %1219 = vmatpush1.bf16.msra.mxu0 0
        %1220 = vmatprep.subr.bf16.mxu0 0
        %1221 = vmatpush1.bf16.msra.mxu0 0
        %1222 = vmatprep.subr.bf16.mxu0 0
        %1223 = vmatpush1.bf16.msra.mxu0 0
        %1224 = vmatprep.subr.bf16.mxu0 0
        %1225 = vmatpush1.bf16.msra.mxu0 0
        %1226 = vmatprep.subr.bf16.mxu0 0
        %1227 = vmatpush1.bf16.msra.mxu0 0
        %1228 = vmatprep.subr.bf16.mxu0 0
        %1229 = vmatpush1.bf16.msra.mxu0 0
        %1230 = vmatprep.subr.bf16.mxu0 0
        %1231 = vmatpush1.bf16.msra.mxu0 0
        %1232 = vmatprep.mubr.bf16.mxu0 0
        %1233 = vmatmul.mubr.bf16.gmra.mrb[0].mxu0 %v1192
        %v1234 = vpop.f32.mrb[0].mxu0
        %v1235 = vadd.f32 0.0, %v1234
        %v1236 = vpop.f32.mrb[0].mxu0
        %v1237 = vadd.f32 0.0, %v1236
        %v1238 = vpop.f32.mrb[0].mxu0
        %v1239 = vpop.f32.mrb[0].mxu0
        %1240 = vdwg.mxu0
        %v1241 = vadd.f32 %v1155, %v1235
        %v1242 = vadd.f32 %v1156, %v1237
        %v1243 = vld [vmem:[#allocation2 + $0x2] sm:$0x3f]
        %s1244 = scalar_lea.vmem %s3, 28
        %v1245 = vld [vmem:[%s1244] sm:$0xf]
        %v1247 = vcombine.high %v1243, %v1243
        %v1249 = vunpack.c.l.s4 1983009808
        %v1250 = vunpack.c.0.s8 %v1249
        %v1251 = vlaneseq
        %v1252 = vshrl.u32 %v1251, 7
        %v1253 = vsub.s32 %v1250, %v1252
        %v1254 = vrot.slane %v1243, %v1253
        %v1256 = vunpack.c.l.s4 1983009808
        %v1257 = vunpack.c.0.s8 %v1256
        %v1258 = vlaneseq
        %v1259 = vshrl.u32 %v1258, 7
        %v1260 = vsub.s32 %v1257, %v1259
        %v1261 = vrot.slane %v1247, %v1260
        %v1262 = vcombine.high %v1254, %v1254
        %1263 = vrot.lane.b32.xlu0 %v1254, 112
        %v1264 = vpop.permute.xlu0 %1263
        %1265 = vrot.lane.b32.xlu0 %v1262, 112
        %v1266 = vpop.permute.xlu0 %1265
        %1267 = vrot.lane.b32.xlu0 %v1261, 112
        %v1268 = vpop.permute.xlu0 %1267
        %vm1269 = vcmask 916480
        %v1270 = vsel %vm1269, %v1264, %v1266
        %v1271 = vsel %vm1269, %v1266, %v1268
        %v1273 = vsel %vm693, %v1245, 0
        %v1276 = vsel %vm697, %v1270, 0
        %v1279 = vsel %vm697, %v1271, 0
        %1281 = vmatprep.subr.bf16.mxu0 %v1279
        %1282 = vmatpush1.bf16.msra.mxu0 %v1276
        %1283 = vmatprep.subr.bf16.mxu0 0
        %1284 = vmatpush1.bf16.msra.mxu0 0
        %1285 = vmatprep.subr.bf16.mxu0 0
        %1286 = vmatpush1.bf16.msra.mxu0 0
        %1287 = vmatprep.subr.bf16.mxu0 0
        %1288 = vmatpush1.bf16.msra.mxu0 0
        %1289 = vmatprep.subr.bf16.mxu0 0
        %1290 = vmatpush1.bf16.msra.mxu0 0
        %1291 = vmatprep.subr.bf16.mxu0 0
        %1292 = vmatpush1.bf16.msra.mxu0 0
        %1293 = vmatprep.subr.bf16.mxu0 0
        %1294 = vmatpush1.bf16.msra.mxu0 0
        %1295 = vmatprep.subr.bf16.mxu0 0
        %1296 = vmatpush1.bf16.msra.mxu0 0
        %1297 = vmatprep.subr.bf16.mxu0 0
        %1298 = vmatpush1.bf16.msra.mxu0 0
        %1299 = vmatprep.subr.bf16.mxu0 0
        %1300 = vmatpush1.bf16.msra.mxu0 0
        %1301 = vmatprep.subr.bf16.mxu0 0
        %1302 = vmatpush1.bf16.msra.mxu0 0
        %1303 = vmatprep.subr.bf16.mxu0 0
        %1304 = vmatpush1.bf16.msra.mxu0 0
        %1305 = vmatprep.subr.bf16.mxu0 0
        %1306 = vmatpush1.bf16.msra.mxu0 0
        %1307 = vmatprep.subr.bf16.mxu0 0
        %1308 = vmatpush1.bf16.msra.mxu0 0
        %1309 = vmatprep.subr.bf16.mxu0 0
        %1310 = vmatpush1.bf16.msra.mxu0 0
        %1311 = vmatprep.subr.bf16.mxu0 0
        %1312 = vmatpush1.bf16.msra.mxu0 0
        %1313 = vmatprep.mubr.bf16.mxu0 0
        %1314 = vmatmul.mubr.bf16.gmra.mrb[0].mxu0 %v1273
        %v1315 = vpop.f32.mrb[0].mxu0
        %v1316 = vadd.f32 0.0, %v1315
        %v1317 = vpop.f32.mrb[0].mxu0
        %v1318 = vadd.f32 0.0, %v1317
        %v1319 = vpop.f32.mrb[0].mxu0
        %v1320 = vpop.f32.mrb[0].mxu0
        %1321 = vdwg.mxu0
        %v1322 = vadd.f32 %v1241, %v1316
        %v1323 = vadd.f32 %v1242, %v1318
        %v1324 = vld [vmem:[#allocation2 + $0x2] sm:$0x3f]
        %1325 = vrot.lane.b32.xlu0 %v831, 17
        %v1326 = vpop.permute.xlu0 %1325
        %v1327 = vrot.slane %v1326, 6
        %v1328 = vsel %vm768, %v1327, %v1326
        %v1330 = vmul.bf16 %v1324, %v1328
        %s1331 = scalar_lea.vmem %s3, 32
        %v1332 = vld [vmem:[%s1331] sm:$0xf]
        %v1334 = vcombine.high %v1330, %v1330
        %v1336 = vunpack.c.l.s4 1983009808
        %v1337 = vunpack.c.0.s8 %v1336
        %v1338 = vlaneseq
        %v1339 = vshrl.u32 %v1338, 7
        %v1340 = vsub.s32 %v1337, %v1339
        %v1341 = vrot.slane %v1330, %v1340
        %v1343 = vunpack.c.l.s4 1983009808
        %v1344 = vunpack.c.0.s8 %v1343
        %v1345 = vlaneseq
        %v1346 = vshrl.u32 %v1345, 7
        %v1347 = vsub.s32 %v1344, %v1346
        %v1348 = vrot.slane %v1334, %v1347
        %v1349 = vcombine.high %v1341, %v1341
        %1350 = vrot.lane.b32.xlu0 %v1341, 111
        %v1351 = vpop.permute.xlu0 %1350
        %1352 = vrot.lane.b32.xlu0 %v1349, 111
        %v1353 = vpop.permute.xlu0 %1352
        %1354 = vrot.lane.b32.xlu0 %v1348, 111
        %v1355 = vpop.permute.xlu0 %1354
        %v1356 = vsel %vm660, %v1351, %v1353
        %v1357 = vsel %vm660, %v1353, %v1355
        %v1359 = vsel %vm693, %v1332, 0
        %v1362 = vsel %vm697, %v1356, 0
        %v1365 = vsel %vm697, %v1357, 0
        %1367 = vmatprep.subr.bf16.mxu0 %v1365
        %1368 = vmatpush1.bf16.msra.mxu0 %v1362
        %1369 = vmatprep.subr.bf16.mxu0 0
        %1370 = vmatpush1.bf16.msra.mxu0 0
        %1371 = vmatprep.subr.bf16.mxu0 0
        %1372 = vmatpush1.bf16.msra.mxu0 0
        %1373 = vmatprep.subr.bf16.mxu0 0
        %1374 = vmatpush1.bf16.msra.mxu0 0
        %1375 = vmatprep.subr.bf16.mxu0 0
        %1376 = vmatpush1.bf16.msra.mxu0 0
        %1377 = vmatprep.subr.bf16.mxu0 0
        %1378 = vmatpush1.bf16.msra.mxu0 0
        %1379 = vmatprep.subr.bf16.mxu0 0
        %1380 = vmatpush1.bf16.msra.mxu0 0
        %1381 = vmatprep.subr.bf16.mxu0 0
        %1382 = vmatpush1.bf16.msra.mxu0 0
        %1383 = vmatprep.subr.bf16.mxu0 0
        %1384 = vmatpush1.bf16.msra.mxu0 0
        %1385 = vmatprep.subr.bf16.mxu0 0
        %1386 = vmatpush1.bf16.msra.mxu0 0
        %1387 = vmatprep.subr.bf16.mxu0 0
        %1388 = vmatpush1.bf16.msra.mxu0 0
        %1389 = vmatprep.subr.bf16.mxu0 0
        %1390 = vmatpush1.bf16.msra.mxu0 0
        %1391 = vmatprep.subr.bf16.mxu0 0
        %1392 = vmatpush1.bf16.msra.mxu0 0
        %1393 = vmatprep.subr.bf16.mxu0 0
        %1394 = vmatpush1.bf16.msra.mxu0 0
        %1395 = vmatprep.subr.bf16.mxu0 0
        %1396 = vmatpush1.bf16.msra.mxu0 0
        %1397 = vmatprep.subr.bf16.mxu0 0
        %1398 = vmatpush1.bf16.msra.mxu0 0
        %1399 = vmatprep.mubr.bf16.mxu0 0
        %1400 = vmatmul.mubr.bf16.gmra.mrb[0].mxu0 %v1359
        %v1401 = vpop.f32.mrb[0].mxu0
        %v1402 = vadd.f32 0.0, %v1401
        %v1403 = vpop.f32.mrb[0].mxu0
        %v1404 = vadd.f32 0.0, %v1403
        %v1405 = vpop.f32.mrb[0].mxu0
        %v1406 = vpop.f32.mrb[0].mxu0
        %1407 = vdwg.mxu0
        %v1408 = vadd.f32 %v1322, %v1402
        %v1409 = vadd.f32 %v1323, %v1404
        %v1410 = vld [vmem:[%s537] sm:$0xff]
        %1412 = vset.pattern.permute.xlu0 0
        %1413 = vperm.xlu0 %1412, %v1410
        %v1414 = vpop.permute.xlu0 %1413
        %v1416 = vmul.f32 %v1408, %v1414
        %v1417 = vmul.f32 %v1409, %v1414
        %v1418 = vld [vmem:[%s4] sm:$0xff]
        %1420 = vset.pattern.permute.xlu0 0
        %1421 = vperm.xlu0 %1420, %v1418
        %v1422 = vpop.permute.xlu0 %1421
        %v1424 = vadd.f32 %v1416, %v1422
        %v1425 = vadd.f32 %v1417, %v1422
        %vm1426 = vcmp.ge.f32.partialorder %v1424, 0.0
        %vm1427 = vcmp.ge.f32.partialorder %v1425, 0.0
        %v1428 = vmul.f32 %v1424, 0.2
        %v1429 = vmul.f32 %v1425, 0.2
        %v1430 = vsel %vm1426, %v1424, %v1428
        %v1431 = vsel %vm1427, %v1425, %v1429
        %v1432 = vld [vmem:[%s541] sm:$0xff]
        %1434 = vset.pattern.permute.xlu0 0
        %1435 = vperm.xlu0 %1434, %v1432
        %v1436 = vpop.permute.xlu0 %1435
        %v1438 = vmul.f32 %v1430, %v1436
        %v1439 = vmul.f32 %v1431, %v1436
        %v1440 = vpack.c.bf16 %v1438, %v1438
        %v1441 = vpack.c.bf16 %v1439, %v1439
        %1442 = vst [vmem:[#allocation3] sm:$0xf] 0
        %1443 = vst [vmem:[#allocation3 + $0xc] sm:$0xf] 0
        %v1446 = vunpack.c.l.b16 %v1440
        %v1447 = vunpack.c.l.b16 %v1441
        %v1448 = vpack.c.b16 %v1447, %v1446
        %1450 = vst [vmem:[#allocation3 + $0x4] sm:$0xff] %v1448
        %v1451 = vld [vmem:[#allocation3] sm:$0xff]
        %v1452 = vld [vmem:[#allocation3 + $0x8] sm:$0xf]
        %v1453 = vunpack.c.l.b16 %v595
        %v1454 = vunpack.c.l.b16 %v596
        %v1455 = vpack.c.b16 %v1454, %v1453
        %1456 = vrot.lane.b32.xlu0 %v1455, 111
        %v1457 = vpop.permute.xlu0 %1456
        %v1458 = vrot.slane %v1457, 4
        %v1459 = vsel %vm660, %v1458, %v1457
        %v1462 = vmul.bf16 %v1451, %v1459
        %v1463 = vmul.bf16 %v1452, %v1458
        %v1464 = vld [vmem:[%s7] sm:$0xf]
        %s1465 = scalar_lea.vmem %s7, 4
        %v1466 = vld [vmem:[%s1465] sm:$0xf]
        %v1469 = vunpack.c.l.b16 %v1451
        %v1470 = vunpack.c.h.b16 %v1451
        %v1471 = vunpack.c.l.b16 %v1452
        %v1472 = vpack.c.b16 %v1469, %v1469
        %v1473 = vpack.c.b16 %v1470, %v1470
        %v1474 = vpack.c.b16 %v1471, %v1471
        %1475 = vrot.lane.b32.xlu0 %v1472, 16
        %v1476 = vpop.permute.xlu0 %1475
        %1477 = vrot.lane.b32.xlu0 %v1473, 16
        %v1478 = vpop.permute.xlu0 %1477
        %1479 = vrot.lane.b32.xlu0 %v1474, 16
        %v1480 = vpop.permute.xlu0 %1479
        %v1481 = vsel %vm690, %v1476, %v1478
        %v1482 = vsel %vm690, %v1478, %v1480
        %vm1483 = vcmask 64512
        %v1485 = vsel %vm1483, %v1466, 0
        %vm1487 = vcmask 1043456
        %v1489 = vsel %vm1487, %v1481, 0
        %v1492 = vsel %vm1487, %v1482, 0
        %1494 = vmatprep.subr.bf16.mxu0 %v1492
        %1495 = vmatpush1.bf16.msra.mxu0 %v1489
        %1496 = vmatprep.subr.bf16.mxu0 0
        %1497 = vmatpush1.bf16.msra.mxu0 0
        %1498 = vmatprep.subr.bf16.mxu0 0
        %1499 = vmatpush1.bf16.msra.mxu0 0
        %1500 = vmatprep.subr.bf16.mxu0 0
        %1501 = vmatpush1.bf16.msra.mxu0 0
        %1502 = vmatprep.subr.bf16.mxu0 0
        %1503 = vmatpush1.bf16.msra.mxu0 0
        %1504 = vmatprep.subr.bf16.mxu0 0
        %1505 = vmatpush1.bf16.msra.mxu0 0
        %1506 = vmatprep.subr.bf16.mxu0 0
        %1507 = vmatpush1.bf16.msra.mxu0 0
        %1508 = vmatprep.subr.bf16.mxu0 0
        %1509 = vmatpush1.bf16.msra.mxu0 0
        %1510 = vmatprep.subr.bf16.mxu0 0
        %1511 = vmatpush1.bf16.msra.mxu0 0
        %1512 = vmatprep.subr.bf16.mxu0 0
        %1513 = vmatpush1.bf16.msra.mxu0 0
        %1514 = vmatprep.subr.bf16.mxu0 0
        %1515 = vmatpush1.bf16.msra.mxu0 0
        %1516 = vmatprep.subr.bf16.mxu0 0
        %1517 = vmatpush1.bf16.msra.mxu0 0
        %1518 = vmatprep.subr.bf16.mxu0 0
        %1519 = vmatpush1.bf16.msra.mxu0 0
        %1520 = vmatprep.subr.bf16.mxu0 0
        %1521 = vmatpush1.bf16.msra.mxu0 0
        %1522 = vmatprep.subr.bf16.mxu0 0
        %1523 = vmatpush1.bf16.msra.mxu0 0
        %1524 = vmatprep.subr.bf16.mxu0 0
        %1525 = vmatpush1.bf16.msra.mxu0 0
        %1526 = vmatprep.mubr.bf16.mxu0 0
        %1527 = vmatmul.mubr.bf16.gmra.mrb[0].mxu0 %v1485
        %v1528 = vpop.f32.mrb[0].mxu0
        %v1529 = vadd.f32 0.0, %v1528
        %v1530 = vpop.f32.mrb[0].mxu0
        %v1531 = vadd.f32 0.0, %v1530
        %v1532 = vpop.f32.mrb[0].mxu0
        %v1533 = vpop.f32.mrb[0].mxu0
        %1534 = vdwg.mxu0
        %v1537 = vunpack.c.l.b16 %v1462
        %v1538 = vunpack.c.h.b16 %v1462
        %v1539 = vunpack.c.l.b16 %v1463
        %v1540 = vpack.c.b16 %v1537, %v1537
        %v1541 = vpack.c.b16 %v1538, %v1538
        %v1542 = vpack.c.b16 %v1539, %v1539
        %1543 = vrot.lane.b32.xlu0 %v1540, 17
        %v1544 = vpop.permute.xlu0 %1543
        %1545 = vrot.lane.b32.xlu0 %v1541, 17
        %v1546 = vpop.permute.xlu0 %1545
        %1547 = vrot.lane.b32.xlu0 %v1542, 17
        %v1548 = vpop.permute.xlu0 %1547
        %v1549 = vsel %vm768, %v1544, %v1546
        %v1550 = vsel %vm768, %v1546, %v1548
        %v1552 = vsel %vm1483, %v1464, 0
        %v1555 = vsel %vm1487, %v1549, 0
        %v1558 = vsel %vm1487, %v1550, 0
        %1560 = vmatprep.subr.bf16.mxu0 %v1558
        %1561 = vmatpush1.bf16.msra.mxu0 %v1555
        %1562 = vmatprep.subr.bf16.mxu0 0
        %1563 = vmatpush1.bf16.msra.mxu0 0
        %1564 = vmatprep.subr.bf16.mxu0 0
        %1565 = vmatpush1.bf16.msra.mxu0 0
        %1566 = vmatprep.subr.bf16.mxu0 0
        %1567 = vmatpush1.bf16.msra.mxu0 0
        %1568 = vmatprep.subr.bf16.mxu0 0
        %1569 = vmatpush1.bf16.msra.mxu0 0
        %1570 = vmatprep.subr.bf16.mxu0 0
        %1571 = vmatpush1.bf16.msra.mxu0 0
        %1572 = vmatprep.subr.bf16.mxu0 0
        %1573 = vmatpush1.bf16.msra.mxu0 0
        %1574 = vmatprep.subr.bf16.mxu0 0
        %1575 = vmatpush1.bf16.msra.mxu0 0
        %1576 = vmatprep.subr.bf16.mxu0 0
        %1577 = vmatpush1.bf16.msra.mxu0 0
        %1578 = vmatprep.subr.bf16.mxu0 0
        %1579 = vmatpush1.bf16.msra.mxu0 0
        %1580 = vmatprep.subr.bf16.mxu0 0
        %1581 = vmatpush1.bf16.msra.mxu0 0
        %1582 = vmatprep.subr.bf16.mxu0 0
        %1583 = vmatpush1.bf16.msra.mxu0 0
        %1584 = vmatprep.subr.bf16.mxu0 0
        %1585 = vmatpush1.bf16.msra.mxu0 0
        %1586 = vmatprep.subr.bf16.mxu0 0
        %1587 = vmatpush1.bf16.msra.mxu0 0
        %1588 = vmatprep.subr.bf16.mxu0 0
        %1589 = vmatpush1.bf16.msra.mxu0 0
        %1590 = vmatprep.subr.bf16.mxu0 0
        %1591 = vmatpush1.bf16.msra.mxu0 0
        %1592 = vmatprep.mubr.bf16.mxu0 0
        %1593 = vmatmul.mubr.bf16.gmra.mrb[0].mxu0 %v1552
        %v1594 = vpop.f32.mrb[0].mxu0
        %v1595 = vadd.f32 %v1529, %v1594
        %v1596 = vpop.f32.mrb[0].mxu0
        %v1597 = vadd.f32 %v1531, %v1596
        %v1598 = vpop.f32.mrb[0].mxu0
        %v1599 = vpop.f32.mrb[0].mxu0
        %1600 = vdwg.mxu0
        %v1601 = vunpack.c.l.b16 %v609
        %v1602 = vunpack.c.l.b16 %v610
        %v1603 = vpack.c.b16 %v1602, %v1601
        %1604 = vrot.lane.b32.xlu0 %v1603, 113
        %v1605 = vpop.permute.xlu0 %1604
        %v1606 = vrot.slane %v1605, 4
        %v1607 = vsel %vm835, %v1606, %v1605
        %v1610 = vmul.bf16 %v1451, %v1607
        %v1611 = vmul.bf16 %v1452, %v1606
        %s1612 = scalar_lea.vmem %s7, 8
        %v1613 = vld [vmem:[%s1612] sm:$0xf]
        %v1616 = vunpack.c.l.b16 %v1610
        %v1617 = vunpack.c.h.b16 %v1610
        %v1618 = vunpack.c.l.b16 %v1611
        %v1619 = vpack.c.b16 %v1616, %v1616
        %v1620 = vpack.c.b16 %v1617, %v1617
        %v1621 = vpack.c.b16 %v1618, %v1618
        %1622 = vrot.lane.b32.xlu0 %v1619, 15
        %v1623 = vpop.permute.xlu0 %1622
        %1624 = vrot.lane.b32.xlu0 %v1620, 15
        %v1625 = vpop.permute.xlu0 %1624
        %1626 = vrot.lane.b32.xlu0 %v1621, 15
        %v1627 = vpop.permute.xlu0 %1626
        %v1628 = vsel %vm864, %v1623, %v1625
        %v1629 = vsel %vm864, %v1625, %v1627
        %v1631 = vsel %vm1483, %v1613, 0
        %v1634 = vsel %vm1487, %v1628, 0
        %v1637 = vsel %vm1487, %v1629, 0
        %1639 = vmatprep.subr.bf16.mxu0 %v1637
        %1640 = vmatpush1.bf16.msra.mxu0 %v1634
        %1641 = vmatprep.subr.bf16.mxu0 0
        %1642 = vmatpush1.bf16.msra.mxu0 0
        %1643 = vmatprep.subr.bf16.mxu0 0
        %1644 = vmatpush1.bf16.msra.mxu0 0
        %1645 = vmatprep.subr.bf16.mxu0 0
        %1646 = vmatpush1.bf16.msra.mxu0 0
        %1647 = vmatprep.subr.bf16.mxu0 0
        %1648 = vmatpush1.bf16.msra.mxu0 0
        %1649 = vmatprep.subr.bf16.mxu0 0
        %1650 = vmatpush1.bf16.msra.mxu0 0
        %1651 = vmatprep.subr.bf16.mxu0 0
        %1652 = vmatpush1.bf16.msra.mxu0 0
        %1653 = vmatprep.subr.bf16.mxu0 0
        %1654 = vmatpush1.bf16.msra.mxu0 0
        %1655 = vmatprep.subr.bf16.mxu0 0
        %1656 = vmatpush1.bf16.msra.mxu0 0
        %1657 = vmatprep.subr.bf16.mxu0 0
        %1658 = vmatpush1.bf16.msra.mxu0 0
        %1659 = vmatprep.subr.bf16.mxu0 0
        %1660 = vmatpush1.bf16.msra.mxu0 0
        %1661 = vmatprep.subr.bf16.mxu0 0
        %1662 = vmatpush1.bf16.msra.mxu0 0
        %1663 = vmatprep.subr.bf16.mxu0 0
        %1664 = vmatpush1.bf16.msra.mxu0 0
        %1665 = vmatprep.subr.bf16.mxu0 0
        %1666 = vmatpush1.bf16.msra.mxu0 0
        %1667 = vmatprep.subr.bf16.mxu0 0
        %1668 = vmatpush1.bf16.msra.mxu0 0
        %1669 = vmatprep.subr.bf16.mxu0 0
        %1670 = vmatpush1.bf16.msra.mxu0 0
        %1671 = vmatprep.mubr.bf16.mxu0 0
        %1672 = vmatmul.mubr.bf16.gmra.mrb[0].mxu0 %v1631
        %v1673 = vpop.f32.mrb[0].mxu0
        %v1674 = vadd.f32 0.0, %v1673
        %v1675 = vpop.f32.mrb[0].mxu0
        %v1676 = vadd.f32 0.0, %v1675
        %v1677 = vpop.f32.mrb[0].mxu0
        %v1678 = vpop.f32.mrb[0].mxu0
        %1679 = vdwg.mxu0
        %v1680 = vadd.f32 %v1595, %v1674
        %v1681 = vadd.f32 %v1597, %v1676
        %1682 = vrot.lane.b32.xlu0 %v1455, 127
        %v1683 = vpop.permute.xlu0 %1682
        %v1684 = vrot.slane %v1683, 4
        %v1685 = vsel %vm923, %v1684, %v1683
        %v1688 = vmul.bf16 %v1451, %v1685
        %v1689 = vmul.bf16 %v1452, %v1684
        %s1690 = scalar_lea.vmem %s7, 12
        %v1691 = vld [vmem:[%s1690] sm:$0xf]
        %v1694 = vunpack.c.l.b16 %v1688
        %v1695 = vunpack.c.h.b16 %v1688
        %v1696 = vunpack.c.l.b16 %v1689
        %v1697 = vpack.c.b16 %v1694, %v1694
        %v1698 = vpack.c.b16 %v1695, %v1695
        %v1699 = vpack.c.b16 %v1696, %v1696
        %1700 = vrot.lane.b32.xlu0 %v1697, 1
        %v1701 = vpop.permute.xlu0 %1700
        %1702 = vrot.lane.b32.xlu0 %v1698, 1
        %v1703 = vpop.permute.xlu0 %1702
        %1704 = vrot.lane.b32.xlu0 %v1699, 1
        %v1705 = vpop.permute.xlu0 %1704
        %v1706 = vsel %vm952, %v1701, %v1703
        %v1707 = vsel %vm952, %v1703, %v1705
        %v1709 = vsel %vm1483, %v1691, 0
        %v1712 = vsel %vm1487, %v1706, 0
        %v1715 = vsel %vm1487, %v1707, 0
        %1717 = vmatprep.subr.bf16.mxu0 %v1715
        %1718 = vmatpush1.bf16.msra.mxu0 %v1712
        %1719 = vmatprep.subr.bf16.mxu0 0
        %1720 = vmatpush1.bf16.msra.mxu0 0
        %1721 = vmatprep.subr.bf16.mxu0 0
        %1722 = vmatpush1.bf16.msra.mxu0 0
        %1723 = vmatprep.subr.bf16.mxu0 0
        %1724 = vmatpush1.bf16.msra.mxu0 0
        %1725 = vmatprep.subr.bf16.mxu0 0
        %1726 = vmatpush1.bf16.msra.mxu0 0
        %1727 = vmatprep.subr.bf16.mxu0 0
        %1728 = vmatpush1.bf16.msra.mxu0 0
        %1729 = vmatprep.subr.bf16.mxu0 0
        %1730 = vmatpush1.bf16.msra.mxu0 0
        %1731 = vmatprep.subr.bf16.mxu0 0
        %1732 = vmatpush1.bf16.msra.mxu0 0
        %1733 = vmatprep.subr.bf16.mxu0 0
        %1734 = vmatpush1.bf16.msra.mxu0 0
        %1735 = vmatprep.subr.bf16.mxu0 0
        %1736 = vmatpush1.bf16.msra.mxu0 0
        %1737 = vmatprep.subr.bf16.mxu0 0
        %1738 = vmatpush1.bf16.msra.mxu0 0
        %1739 = vmatprep.subr.bf16.mxu0 0
        %1740 = vmatpush1.bf16.msra.mxu0 0
        %1741 = vmatprep.subr.bf16.mxu0 0
        %1742 = vmatpush1.bf16.msra.mxu0 0
        %1743 = vmatprep.subr.bf16.mxu0 0
        %1744 = vmatpush1.bf16.msra.mxu0 0
        %1745 = vmatprep.subr.bf16.mxu0 0
        %1746 = vmatpush1.bf16.msra.mxu0 0
        %1747 = vmatprep.subr.bf16.mxu0 0
        %1748 = vmatpush1.bf16.msra.mxu0 0
        %1749 = vmatprep.mubr.bf16.mxu0 0
        %1750 = vmatmul.mubr.bf16.gmra.mrb[0].mxu0 %v1709
        %v1751 = vpop.f32.mrb[0].mxu0
        %v1752 = vadd.f32 0.0, %v1751
        %v1753 = vpop.f32.mrb[0].mxu0
        %v1754 = vadd.f32 0.0, %v1753
        %v1755 = vpop.f32.mrb[0].mxu0
        %v1756 = vpop.f32.mrb[0].mxu0
        %1757 = vdwg.mxu0
        %v1758 = vadd.f32 %v1680, %v1752
        %v1759 = vadd.f32 %v1681, %v1754
        %v1760 = vld [vmem:[#allocation3 + $0x4] sm:$0xff]
        %s1761 = scalar_lea.vmem %s7, 16
        %v1762 = vld [vmem:[%s1761] sm:$0xf]
        %v1764 = vunpack.c.l.b16 %v1760
        %v1765 = vunpack.c.h.b16 %v1760
        %v1766 = vpack.c.b16 %v1764, %v1764
        %v1767 = vpack.c.b16 %v1765, %v1765
        %v1769 = vsel %vm1483, %v1762, 0
        %v1772 = vsel %vm1487, %v1766, 0
        %v1775 = vsel %vm1487, %v1767, 0
        %1777 = vmatprep.subr.bf16.mxu0 %v1775
        %1778 = vmatpush1.bf16.msra.mxu0 %v1772
        %1779 = vmatprep.subr.bf16.mxu0 0
        %1780 = vmatpush1.bf16.msra.mxu0 0
        %1781 = vmatprep.subr.bf16.mxu0 0
        %1782 = vmatpush1.bf16.msra.mxu0 0
        %1783 = vmatprep.subr.bf16.mxu0 0
        %1784 = vmatpush1.bf16.msra.mxu0 0
        %1785 = vmatprep.subr.bf16.mxu0 0
        %1786 = vmatpush1.bf16.msra.mxu0 0
        %1787 = vmatprep.subr.bf16.mxu0 0
        %1788 = vmatpush1.bf16.msra.mxu0 0
        %1789 = vmatprep.subr.bf16.mxu0 0
        %1790 = vmatpush1.bf16.msra.mxu0 0
        %1791 = vmatprep.subr.bf16.mxu0 0
        %1792 = vmatpush1.bf16.msra.mxu0 0
        %1793 = vmatprep.subr.bf16.mxu0 0
        %1794 = vmatpush1.bf16.msra.mxu0 0
        %1795 = vmatprep.subr.bf16.mxu0 0
        %1796 = vmatpush1.bf16.msra.mxu0 0
        %1797 = vmatprep.subr.bf16.mxu0 0
        %1798 = vmatpush1.bf16.msra.mxu0 0
        %1799 = vmatprep.subr.bf16.mxu0 0
        %1800 = vmatpush1.bf16.msra.mxu0 0
        %1801 = vmatprep.subr.bf16.mxu0 0
        %1802 = vmatpush1.bf16.msra.mxu0 0
        %1803 = vmatprep.subr.bf16.mxu0 0
        %1804 = vmatpush1.bf16.msra.mxu0 0
        %1805 = vmatprep.subr.bf16.mxu0 0
        %1806 = vmatpush1.bf16.msra.mxu0 0
        %1807 = vmatprep.subr.bf16.mxu0 0
        %1808 = vmatpush1.bf16.msra.mxu0 0
        %1809 = vmatprep.mubr.bf16.mxu0 0
        %1810 = vmatmul.mubr.bf16.gmra.mrb[0].mxu0 %v1769
        %v1811 = vpop.f32.mrb[0].mxu0
        %v1812 = vadd.f32 0.0, %v1811
        %v1813 = vpop.f32.mrb[0].mxu0
        %v1814 = vadd.f32 0.0, %v1813
        %v1815 = vpop.f32.mrb[0].mxu0
        %v1816 = vpop.f32.mrb[0].mxu0
        %1817 = vdwg.mxu0
        %v1818 = vadd.f32 %v1758, %v1812
        %v1819 = vadd.f32 %v1759, %v1814
        %v1820 = vld [vmem:[#allocation3 + $0x4] sm:$0xff]
        %v1821 = vld [vmem:[#allocation3 + $0xc] sm:$0xf]
        %1822 = vrot.lane.b32.xlu0 %v1603, 1
        %v1823 = vpop.permute.xlu0 %1822
        %v1824 = vrot.slane %v1823, 4
        %v1825 = vsel %vm952, %v1824, %v1823
        %v1828 = vmul.bf16 %v1820, %v1825
        %v1829 = vmul.bf16 %v1821, %v1824
        %s1830 = scalar_lea.vmem %s7, 20
        %v1831 = vld [vmem:[%s1830] sm:$0xf]
        %v1834 = vunpack.c.l.b16 %v1828
        %v1835 = vunpack.c.h.b16 %v1828
        %v1836 = vunpack.c.l.b16 %v1829
        %v1837 = vpack.c.b16 %v1834, %v1834
        %v1838 = vpack.c.b16 %v1835, %v1835
        %v1839 = vpack.c.b16 %v1836, %v1836
        %1840 = vrot.lane.b32.xlu0 %v1837, 127
        %v1841 = vpop.permute.xlu0 %1840
        %1842 = vrot.lane.b32.xlu0 %v1838, 127
        %v1843 = vpop.permute.xlu0 %1842
        %1844 = vrot.lane.b32.xlu0 %v1839, 127
        %v1845 = vpop.permute.xlu0 %1844
        %v1846 = vsel %vm923, %v1841, %v1843
        %v1847 = vsel %vm923, %v1843, %v1845
        %v1849 = vsel %vm1483, %v1831, 0
        %v1852 = vsel %vm1487, %v1846, 0
        %v1855 = vsel %vm1487, %v1847, 0
        %1857 = vmatprep.subr.bf16.mxu0 %v1855
        %1858 = vmatpush1.bf16.msra.mxu0 %v1852
        %1859 = vmatprep.subr.bf16.mxu0 0
        %1860 = vmatpush1.bf16.msra.mxu0 0
        %1861 = vmatprep.subr.bf16.mxu0 0
        %1862 = vmatpush1.bf16.msra.mxu0 0
        %1863 = vmatprep.subr.bf16.mxu0 0
        %1864 = vmatpush1.bf16.msra.mxu0 0
        %1865 = vmatprep.subr.bf16.mxu0 0
        %1866 = vmatpush1.bf16.msra.mxu0 0
        %1867 = vmatprep.subr.bf16.mxu0 0
        %1868 = vmatpush1.bf16.msra.mxu0 0
        %1869 = vmatprep.subr.bf16.mxu0 0
        %1870 = vmatpush1.bf16.msra.mxu0 0
        %1871 = vmatprep.subr.bf16.mxu0 0
        %1872 = vmatpush1.bf16.msra.mxu0 0
        %1873 = vmatprep.subr.bf16.mxu0 0
        %1874 = vmatpush1.bf16.msra.mxu0 0
        %1875 = vmatprep.subr.bf16.mxu0 0
        %1876 = vmatpush1.bf16.msra.mxu0 0
        %1877 = vmatprep.subr.bf16.mxu0 0
        %1878 = vmatpush1.bf16.msra.mxu0 0
        %1879 = vmatprep.subr.bf16.mxu0 0
        %1880 = vmatpush1.bf16.msra.mxu0 0
        %1881 = vmatprep.subr.bf16.mxu0 0
        %1882 = vmatpush1.bf16.msra.mxu0 0
        %1883 = vmatprep.subr.bf16.mxu0 0
        %1884 = vmatpush1.bf16.msra.mxu0 0
        %1885 = vmatprep.subr.bf16.mxu0 0
        %1886 = vmatpush1.bf16.msra.mxu0 0
        %1887 = vmatprep.subr.bf16.mxu0 0
        %1888 = vmatpush1.bf16.msra.mxu0 0
        %1889 = vmatprep.mubr.bf16.mxu0 0
        %1890 = vmatmul.mubr.bf16.gmra.mrb[0].mxu0 %v1849
        %v1891 = vpop.f32.mrb[0].mxu0
        %v1892 = vadd.f32 0.0, %v1891
        %v1893 = vpop.f32.mrb[0].mxu0
        %v1894 = vadd.f32 0.0, %v1893
        %v1895 = vpop.f32.mrb[0].mxu0
        %v1896 = vpop.f32.mrb[0].mxu0
        %1897 = vdwg.mxu0
        %v1898 = vadd.f32 %v1818, %v1892
        %v1899 = vadd.f32 %v1819, %v1894
        %1900 = vrot.lane.b32.xlu0 %v1455, 15
        %v1901 = vpop.permute.xlu0 %1900
        %v1902 = vrot.slane %v1901, 4
        %v1903 = vsel %vm864, %v1902, %v1901
        %v1906 = vmul.bf16 %v1820, %v1903
        %v1907 = vmul.bf16 %v1821, %v1902
        %s1908 = scalar_lea.vmem %s7, 24
        %v1909 = vld [vmem:[%s1908] sm:$0xf]
        %v1912 = vunpack.c.l.b16 %v1906
        %v1913 = vunpack.c.h.b16 %v1906
        %v1914 = vunpack.c.l.b16 %v1907
        %v1915 = vpack.c.b16 %v1912, %v1912
        %v1916 = vpack.c.b16 %v1913, %v1913
        %v1917 = vpack.c.b16 %v1914, %v1914
        %1918 = vrot.lane.b32.xlu0 %v1915, 113
        %v1919 = vpop.permute.xlu0 %1918
        %1920 = vrot.lane.b32.xlu0 %v1916, 113
        %v1921 = vpop.permute.xlu0 %1920
        %1922 = vrot.lane.b32.xlu0 %v1917, 113
        %v1923 = vpop.permute.xlu0 %1922
        %v1924 = vsel %vm835, %v1919, %v1921
        %v1925 = vsel %vm835, %v1921, %v1923
        %v1927 = vsel %vm1483, %v1909, 0
        %v1930 = vsel %vm1487, %v1924, 0
        %v1933 = vsel %vm1487, %v1925, 0
        %1935 = vmatprep.subr.bf16.mxu0 %v1933
        %1936 = vmatpush1.bf16.msra.mxu0 %v1930
        %1937 = vmatprep.subr.bf16.mxu0 0
        %1938 = vmatpush1.bf16.msra.mxu0 0
        %1939 = vmatprep.subr.bf16.mxu0 0
        %1940 = vmatpush1.bf16.msra.mxu0 0
        %1941 = vmatprep.subr.bf16.mxu0 0
        %1942 = vmatpush1.bf16.msra.mxu0 0
        %1943 = vmatprep.subr.bf16.mxu0 0
        %1944 = vmatpush1.bf16.msra.mxu0 0
        %1945 = vmatprep.subr.bf16.mxu0 0
        %1946 = vmatpush1.bf16.msra.mxu0 0
        %1947 = vmatprep.subr.bf16.mxu0 0
        %1948 = vmatpush1.bf16.msra.mxu0 0
        %1949 = vmatprep.subr.bf16.mxu0 0
        %1950 = vmatpush1.bf16.msra.mxu0 0
        %1951 = vmatprep.subr.bf16.mxu0 0
        %1952 = vmatpush1.bf16.msra.mxu0 0
        %1953 = vmatprep.subr.bf16.mxu0 0
        %1954 = vmatpush1.bf16.msra.mxu0 0
        %1955 = vmatprep.subr.bf16.mxu0 0
        %1956 = vmatpush1.bf16.msra.mxu0 0
        %1957 = vmatprep.subr.bf16.mxu0 0
        %1958 = vmatpush1.bf16.msra.mxu0 0
        %1959 = vmatprep.subr.bf16.mxu0 0
        %1960 = vmatpush1.bf16.msra.mxu0 0
        %1961 = vmatprep.subr.bf16.mxu0 0
        %1962 = vmatpush1.bf16.msra.mxu0 0
        %1963 = vmatprep.subr.bf16.mxu0 0
        %1964 = vmatpush1.bf16.msra.mxu0 0
        %1965 = vmatprep.subr.bf16.mxu0 0
        %1966 = vmatpush1.bf16.msra.mxu0 0
        %1967 = vmatprep.mubr.bf16.mxu0 0
        %1968 = vmatmul.mubr.bf16.gmra.mrb[0].mxu0 %v1927
        %v1969 = vpop.f32.mrb[0].mxu0
        %v1970 = vadd.f32 0.0, %v1969
        %v1971 = vpop.f32.mrb[0].mxu0
        %v1972 = vadd.f32 0.0, %v1971
        %v1973 = vpop.f32.mrb[0].mxu0
        %v1974 = vpop.f32.mrb[0].mxu0
        %1975 = vdwg.mxu0
        %v1976 = vadd.f32 %v1898, %v1970
        %v1977 = vadd.f32 %v1899, %v1972
        %s1978 = scalar_lea.vmem %s7, 28
        %v1979 = vld [vmem:[%s1978] sm:$0xf]
        %v1982 = vunpack.c.l.b16 %v1820
        %v1983 = vunpack.c.h.b16 %v1820
        %v1984 = vunpack.c.l.b16 %v1821
        %v1985 = vpack.c.b16 %v1982, %v1982
        %v1986 = vpack.c.b16 %v1983, %v1983
        %v1987 = vpack.c.b16 %v1984, %v1984
        %1988 = vrot.lane.b32.xlu0 %v1985, 112
        %v1989 = vpop.permute.xlu0 %1988
        %1990 = vrot.lane.b32.xlu0 %v1986, 112
        %v1991 = vpop.permute.xlu0 %1990
        %1992 = vrot.lane.b32.xlu0 %v1987, 112
        %v1993 = vpop.permute.xlu0 %1992
        %v1994 = vsel %vm1269, %v1989, %v1991
        %v1995 = vsel %vm1269, %v1991, %v1993
        %v1997 = vsel %vm1483, %v1979, 0
        %v2000 = vsel %vm1487, %v1994, 0
        %v2003 = vsel %vm1487, %v1995, 0
        %2005 = vmatprep.subr.bf16.mxu0 %v2003
        %2006 = vmatpush1.bf16.msra.mxu0 %v2000
        %2007 = vmatprep.subr.bf16.mxu0 0
        %2008 = vmatpush1.bf16.msra.mxu0 0
        %2009 = vmatprep.subr.bf16.mxu0 0
        %2010 = vmatpush1.bf16.msra.mxu0 0
        %2011 = vmatprep.subr.bf16.mxu0 0
        %2012 = vmatpush1.bf16.msra.mxu0 0
        %2013 = vmatprep.subr.bf16.mxu0 0
        %2014 = vmatpush1.bf16.msra.mxu0 0
        %2015 = vmatprep.subr.bf16.mxu0 0
        %2016 = vmatpush1.bf16.msra.mxu0 0
        %2017 = vmatprep.subr.bf16.mxu0 0
        %2018 = vmatpush1.bf16.msra.mxu0 0
        %2019 = vmatprep.subr.bf16.mxu0 0
        %2020 = vmatpush1.bf16.msra.mxu0 0
        %2021 = vmatprep.subr.bf16.mxu0 0
        %2022 = vmatpush1.bf16.msra.mxu0 0
        %2023 = vmatprep.subr.bf16.mxu0 0
        %2024 = vmatpush1.bf16.msra.mxu0 0
        %2025 = vmatprep.subr.bf16.mxu0 0
        %2026 = vmatpush1.bf16.msra.mxu0 0
        %2027 = vmatprep.subr.bf16.mxu0 0
        %2028 = vmatpush1.bf16.msra.mxu0 0
        %2029 = vmatprep.subr.bf16.mxu0 0
        %2030 = vmatpush1.bf16.msra.mxu0 0
        %2031 = vmatprep.subr.bf16.mxu0 0
        %2032 = vmatpush1.bf16.msra.mxu0 0
        %2033 = vmatprep.subr.bf16.mxu0 0
        %2034 = vmatpush1.bf16.msra.mxu0 0
        %2035 = vmatprep.subr.bf16.mxu0 0
        %2036 = vmatpush1.bf16.msra.mxu0 0
        %2037 = vmatprep.mubr.bf16.mxu0 0
        %2038 = vmatmul.mubr.bf16.gmra.mrb[0].mxu0 %v1997
        %v2039 = vpop.f32.mrb[0].mxu0
        %v2040 = vadd.f32 0.0, %v2039
        %v2041 = vpop.f32.mrb[0].mxu0
        %v2042 = vadd.f32 0.0, %v2041
        %v2043 = vpop.f32.mrb[0].mxu0
        %v2044 = vpop.f32.mrb[0].mxu0
        %2045 = vdwg.mxu0
        %v2046 = vadd.f32 %v1976, %v2040
        %v2047 = vadd.f32 %v1977, %v2042
        %2048 = vrot.lane.b32.xlu0 %v1603, 17
        %v2049 = vpop.permute.xlu0 %2048
        %v2050 = vrot.slane %v2049, 4
        %v2051 = vsel %vm768, %v2050, %v2049
        %v2054 = vmul.bf16 %v1820, %v2051
        %v2055 = vmul.bf16 %v1821, %v2050
        %s2056 = scalar_lea.vmem %s7, 32
        %v2057 = vld [vmem:[%s2056] sm:$0xf]
        %v2060 = vunpack.c.l.b16 %v2054
        %v2061 = vunpack.c.h.b16 %v2054
        %v2062 = vunpack.c.l.b16 %v2055
        %v2063 = vpack.c.b16 %v2060, %v2060
        %v2064 = vpack.c.b16 %v2061, %v2061
        %v2065 = vpack.c.b16 %v2062, %v2062
        %2066 = vrot.lane.b32.xlu0 %v2063, 111
        %v2067 = vpop.permute.xlu0 %2066
        %2068 = vrot.lane.b32.xlu0 %v2064, 111
        %v2069 = vpop.permute.xlu0 %2068
        %2070 = vrot.lane.b32.xlu0 %v2065, 111
        %v2071 = vpop.permute.xlu0 %2070
        %v2072 = vsel %vm660, %v2067, %v2069
        %v2073 = vsel %vm660, %v2069, %v2071
        %v2075 = vsel %vm1483, %v2057, 0
        %v2078 = vsel %vm1487, %v2072, 0
        %v2081 = vsel %vm1487, %v2073, 0
        %2083 = vmatprep.subr.bf16.mxu0 %v2081
        %2084 = vmatpush1.bf16.msra.mxu0 %v2078
        %2085 = vmatprep.subr.bf16.mxu0 0
        %2086 = vmatpush1.bf16.msra.mxu0 0
        %2087 = vmatprep.subr.bf16.mxu0 0
        %2088 = vmatpush1.bf16.msra.mxu0 0
        %2089 = vmatprep.subr.bf16.mxu0 0
        %2090 = vmatpush1.bf16.msra.mxu0 0
        %2091 = vmatprep.subr.bf16.mxu0 0
        %2092 = vmatpush1.bf16.msra.mxu0 0
        %2093 = vmatprep.subr.bf16.mxu0 0
        %2094 = vmatpush1.bf16.msra.mxu0 0
        %2095 = vmatprep.subr.bf16.mxu0 0
        %2096 = vmatpush1.bf16.msra.mxu0 0
        %2097 = vmatprep.subr.bf16.mxu0 0
        %2098 = vmatpush1.bf16.msra.mxu0 0
        %2099 = vmatprep.subr.bf16.mxu0 0
        %2100 = vmatpush1.bf16.msra.mxu0 0
        %2101 = vmatprep.subr.bf16.mxu0 0
        %2102 = vmatpush1.bf16.msra.mxu0 0
        %2103 = vmatprep.subr.bf16.mxu0 0
        %2104 = vmatpush1.bf16.msra.mxu0 0
        %2105 = vmatprep.subr.bf16.mxu0 0
        %2106 = vmatpush1.bf16.msra.mxu0 0
        %2107 = vmatprep.subr.bf16.mxu0 0
        %2108 = vmatpush1.bf16.msra.mxu0 0
        %2109 = vmatprep.subr.bf16.mxu0 0
        %2110 = vmatpush1.bf16.msra.mxu0 0
        %2111 = vmatprep.subr.bf16.mxu0 0
        %2112 = vmatpush1.bf16.msra.mxu0 0
        %2113 = vmatprep.subr.bf16.mxu0 0
        %2114 = vmatpush1.bf16.msra.mxu0 0
        %2115 = vmatprep.mubr.bf16.mxu0 0
        %2116 = vmatmul.mubr.bf16.gmra.mrb[0].mxu0 %v2075
        %v2117 = vpop.f32.mrb[0].mxu0
        %v2118 = vadd.f32 0.0, %v2117
        %v2119 = vpop.f32.mrb[0].mxu0
        %v2120 = vadd.f32 0.0, %v2119
        %v2121 = vpop.f32.mrb[0].mxu0
        %v2122 = vpop.f32.mrb[0].mxu0
        %2123 = vdwg.mxu0
        %v2124 = vadd.f32 %v2046, %v2118
        %v2125 = vadd.f32 %v2047, %v2120
        %v2126 = vld [vmem:[%s545] sm:$0xff]
        %2128 = vset.pattern.permute.xlu0 0
        %2129 = vperm.xlu0 %2128, %v2126
        %v2130 = vpop.permute.xlu0 %2129
        %v2132 = vmul.f32 %v2124, %v2130
        %v2133 = vmul.f32 %v2125, %v2130
        %v2134 = vld [vmem:[%s8] sm:$0xff]
        %2136 = vset.pattern.permute.xlu0 0
        %2137 = vperm.xlu0 %2136, %v2134
        %v2138 = vpop.permute.xlu0 %2137
        %v2140 = vadd.f32 %v2132, %v2138
        %v2141 = vadd.f32 %v2133, %v2138
        %vm2142 = vcmp.ge.f32.partialorder %v2140, 0.0
        %vm2143 = vcmp.ge.f32.partialorder %v2141, 0.0
        %v2144 = vmul.f32 %v2140, 0.2
        %v2145 = vmul.f32 %v2141, 0.2
        %v2146 = vsel %vm2142, %v2140, %v2144
        %v2147 = vsel %vm2143, %v2141, %v2145
        %2148 = vst [vmem:[%s517] sm:$0xff] %v2146
        %2149 = vst [vmem:[%s517 + $0x8] sm:$0xff] %v2147
        %v2150 = vld [vmem:[%s549] sm:$0x3]
        %v2151 = vpack.c.bf16 %v2146, %v2146
        %v2152 = vpack.c.bf16 %v2147, %v2147
        %v2153 = vld [vmem:[%s10] sm:$0xf]
        %2155 = vset.pattern.permute.xlu0 0
        %2156 = vperm.xlu0 %2155, %v2153
        %v2157 = vpop.permute.xlu0 %2156
        %v2160 = vsel %vm1483, %v2150, 0
        %v2163 = vsel %vm1487, %v2151, 0
        %v2166 = vsel %vm1487, %v2152, 0
        %2168 = vmatprep.subr.bf16.mxu0 %v2166
        %2169 = vmatpush1.bf16.msra.mxu0 %v2163
        %2170 = vmatprep.subr.bf16.mxu0 0
        %2171 = vmatpush1.bf16.msra.mxu0 0
        %2172 = vmatprep.subr.bf16.mxu0 0
        %2173 = vmatpush1.bf16.msra.mxu0 0
        %2174 = vmatprep.subr.bf16.mxu0 0
        %2175 = vmatpush1.bf16.msra.mxu0 0
        %2176 = vmatprep.subr.bf16.mxu0 0
        %2177 = vmatpush1.bf16.msra.mxu0 0
        %2178 = vmatprep.subr.bf16.mxu0 0
        %2179 = vmatpush1.bf16.msra.mxu0 0
        %2180 = vmatprep.subr.bf16.mxu0 0
        %2181 = vmatpush1.bf16.msra.mxu0 0
        %2182 = vmatprep.subr.bf16.mxu0 0
        %2183 = vmatpush1.bf16.msra.mxu0 0
        %2184 = vmatprep.subr.bf16.mxu0 0
        %2185 = vmatpush1.bf16.msra.mxu0 0
        %2186 = vmatprep.subr.bf16.mxu0 0
        %2187 = vmatpush1.bf16.msra.mxu0 0
        %2188 = vmatprep.subr.bf16.mxu0 0
        %2189 = vmatpush1.bf16.msra.mxu0 0
        %2190 = vmatprep.subr.bf16.mxu0 0
        %2191 = vmatpush1.bf16.msra.mxu0 0
        %2192 = vmatprep.subr.bf16.mxu0 0
        %2193 = vmatpush1.bf16.msra.mxu0 0
        %2194 = vmatprep.subr.bf16.mxu0 0
        %2195 = vmatpush1.bf16.msra.mxu0 0
        %2196 = vmatprep.subr.bf16.mxu0 0
        %2197 = vmatpush1.bf16.msra.mxu0 0
        %2198 = vmatprep.subr.bf16.mxu0 0
        %2199 = vmatpush1.bf16.msra.mxu0 0
        %2200 = vmatprep.mubr.bf16.mxu0 0
        %2201 = vmatmul.mubr.bf16.gmra.mrb[0].mxu0 %v2160
        %v2202 = vpop.f32.mrb[0].mxu0
        %v2203 = vadd.f32 %v2157, %v2202
        %v2204 = vpop.f32.mrb[0].mxu0
        %v2205 = vadd.f32 %v2157, %v2204
        %v2206 = vpop.f32.mrb[0].mxu0
        %v2207 = vpop.f32.mrb[0].mxu0
        %2208 = vdwg.mxu0
        %v2209 = vld [vmem:[%s554] sm:$0xff]
        %v2211 = vcombine.high %v2209, %v2209
        %v2213 = vadd.f32 %v2203, %v2209
        %v2214 = vadd.f32 %v2205, %v2211
        %v2217 = vcombine.low %v2213, %v2214
        %2219 = vst [vmem:[%s524] sm:$0x77] %v2217
        %v2220 = vxor.u32 %v2213, 2147483648
        %v2221 = vxor.u32 %v2214, 2147483648
        %v2222 = vmul.f32 %v2220, 1.442695
        %v2223 = vpow.pop %v2222
        %v2224 = vmul.f32 %v2221, 1.442695
        %v2225 = vpow.pop %v2224
        %v2226 = vadd.f32 %v2223, 1.0
        %v2227 = vadd.f32 %v2225, 1.0
        %v2228 = vrcp.pop %v2226
        %v2229 = vmul.f32 1.0, %v2228
        %v2230 = vrcp.pop %v2227
        %v2231 = vmul.f32 1.0, %v2230
        %v2234 = vcombine.low %v2229, %v2231
        %v2236 = vunpack.c.l.s4 1966171168
        %v2237 = vunpack.c.0.s8 %v2236
        %v2238 = vlaneseq
        %v2239 = vshrl.u32 %v2238, 7
        %v2240 = vsub.s32 %v2237, %v2239
        %v2241 = vrot.slane %v2234, %v2240
        %v2242 = vcombine.high %v2241, %v2241
        %v2244 = vunpack.c.l.s4 1966171168
        %v2245 = vunpack.c.0.s8 %v2244
        %v2246 = vlaneseq
        %v2247 = vshrl.u32 %v2246, 7
        %v2248 = vsub.s32 %v2245, %v2247
        %v2249 = vrot.slane %v2242, %v2248
        %v2250 = vcombine.high %v2249, %v2249
        %v2252 = vlaneseq
        %vm2253 = vcmp.ge.s32.totalorder %v2252, 0
        %vm2254 = vcmp.lt.s32.totalorder %v2252, 256
        %vm2255 = vmand %vm2253, %vm2254
        %s2256 = scalar_lea.vmem %s524, 3 [#allocation6]
        %2257 = vst.msk [vmem:[%s2256] ss:$4 sm:$0x3] %vm2255, %v2250
        %s2258 = sand.u32 %s326, 1
        %s2259 = scalar_lea.sflag [#allocation5], %s2258
        %s2260 = sand.u32 %s326, 1
        %s2261 = smul.addr %s2260, 16
        %s2262 = scalar_lea.vmem [#allocation4], %s2261
        %s2263 = sand.u32 %s352, 1
        %s2264 = scalar_lea.sflag [#allocation7], %s2263
        %s2265 = sand.u32 %s352, 1
        %s2266 = smul.addr %s2265, 8
        %s2267 = scalar_lea.vmem [#allocation6], %s2266
        // Predicated region
        $region69: #{tpu_custom_call.1} parent=67 // pred_check
          %p2268 = pneg %p336
        $region70: #{tpu_custom_call.1} parent=67 // pred_check_branch
          %2270 = sbr.rel (%p2268) target = $region72
        $region71: #{tpu_custom_call.1} parent=67 // pred_region
          %s2272 = ssub.s32 256, 256
          %2273 = vsyncadd %s2259, %s2272
          %s2274 = smul.addr %s31, 2
          %s2275 = smul.addr %s2274, 128
          %s2276 = scalar_lea.hbm %s12, %s2275
          %s2278 = sshll.u32 %s2262, 4
          %s2279 = int_to_ptr.vmem [resolvable:$true] %s2278
          %2281 = dma.vmem_to_hbm [thread:$0]  %s2279, 256, %s2276, %s2259
        $region72: #{tpu_custom_call.1} parent=67 // pred_fallthru
          _
        // Predicated region
        $region73: #{tpu_custom_call.1} parent=67 // pred_check
          %p2282 = pneg %p362
        $region74: #{tpu_custom_call.1} parent=67 // pred_check_branch
          %2284 = sbr.rel (%p2282) target = $region76
        $region75: #{tpu_custom_call.1} parent=67 // pred_region
          %s2286 = ssub.s32 128, 128
          %2287 = vsyncadd %s2264, %s2286
          %s2288 = smul.addr %s31, 2
          %s2289 = smul.addr %s2288, 64
          %s2290 = scalar_lea.hbm %s13, %s2289
          %s2292 = sshll.u32 %s2267, 4
          %s2293 = int_to_ptr.vmem [resolvable:$true] %s2292
          %2295 = dma.vmem_to_hbm [thread:$0]  %s2293, 128, %s2290, %s2264
        $region76: #{tpu_custom_call.1} parent=67 // pred_fallthru
          _
      $region68: #{tpu_custom_call.1} parent=5 // pred_fallthru
        _
      %p2296 = scmp.le.s32.totalorder 2, %s26
      // Predicated region
      $region77: #{tpu_custom_call.1} parent=5 // pred_check
        %p2297 = pneg %p2296
      $region78: #{tpu_custom_call.1} parent=5 // pred_check_branch
        %2299 = sbr.rel (%p2297) target = $region80
      $region79: #{tpu_custom_call.1} parent=5 // pred_region
        %s2300 = ssub.s32 %s26, 2
        // Predicated region
        $region81: #{tpu_custom_call.1} parent=79 // pred_check
          %p2301 = pneg %p342
        $region82: #{tpu_custom_call.1} parent=79 // pred_check_branch
          %2303 = sbr.rel (%p2301) target = $region84
        $region83: #{tpu_custom_call.1} parent=79 // pred_region
          %s2304 = sand.u32 %s327, 1
          %s2305 = scalar_lea.sflag [#allocation5], %s2304
          %s2306 = sand.u32 %s327, 1
          %s2307 = smul.addr %s2306, 16
          %s2308 = scalar_lea.vmem [#allocation4], %s2307
          %2309 = dma.done %s2305, 256
        $region84: #{tpu_custom_call.1} parent=79 // pred_fallthru
          _
        // Predicated region
        $region85: #{tpu_custom_call.1} parent=79 // pred_check
          %p2310 = pneg %p368
        $region86: #{tpu_custom_call.1} parent=79 // pred_check_branch
          %2312 = sbr.rel (%p2310) target = $region88
        $region87: #{tpu_custom_call.1} parent=79 // pred_region
          %s2313 = sand.u32 %s353, 1
          %s2314 = scalar_lea.sflag [#allocation7], %s2313
          %s2315 = sand.u32 %s353, 1
          %s2316 = smul.addr %s2315, 8
          %s2317 = scalar_lea.vmem [#allocation6], %s2316
          %2318 = dma.done %s2314, 128
        $region88: #{tpu_custom_call.1} parent=79 // pred_fallthru
          _
      $region80: #{tpu_custom_call.1} parent=5 // pred_fallthru
        _
    $region6: #{tpu_custom_call.1} parent=1 // loop_footer
      %s30 = sadd.s32 1, %s26
    $region7: #{tpu_custom_call.1} parent=1 // loop_footer_branch
      %25 = sbr.rel target = $region3
    $region8: #{tpu_custom_call.1} parent=1 // loop_exit
      _
    %2319 = vsyncpa [#allocation5], 1
    %s2320 = scalar_lea.sflag [#allocation5], 1
    %2321 = vsyncpa %s2320, 1
    %2322 = vsyncpa [#allocation7], 1
    %s2323 = scalar_lea.sflag [#allocation7], 1
    %2324 = vsyncpa %s2323, 1

</llo_original>
